<compile_context>
chip_gen: v7x
topology: tpu7x:2x2x1
jax: 0.10.0
libtpu: 0.0.40
codegen_flags: <defaults>
</compile_context>

<pallas_src>
import jax
import jax.numpy as jnp
import numpy as np
from jax import lax
from jax.experimental import pallas as pl
from jax.experimental.pallas import tpu as pltpu

_BN_EPS = 1e-5
_MAG_EPS2 = 1e-16        # clamp on |z|^2 before rsqrt (≈ max(|z|, 1e-8))


def _cdiv(a, b):
    return (a + b - 1) // b


def _round_up(a, b):
    return _cdiv(a, b) * b


# ----------------------------------------------------------------------------
# Kernels
# ----------------------------------------------------------------------------
def _make_conv_kernel(c_in, c_out, w_pad, tile_m, guard, fuse_bn_relu):
    """Complex 3x3 conv on a flattened, zero-padded spatial layout.

    Per grid step the kernel sees a lane tile of `tile_m` output positions plus
    a `2*guard`-column halo taken from the neighbouring block.  The nine taps
    are static column offsets {ky*w_pad + kx} into that window, gathered into a
    (9*2*c_in, tile_m) matrix and contracted with the block-complex weight
    [[Wr,-Wi],[Wi,Wr]] in ONE MXU matmul.  Optionally a radial-BN + CReLU
    prologue (scale = a + b*rsqrt(|z|^2)) is applied once per window column
    *before* the tap expansion.  Non-interior (padding) columns are masked out
    of both the stored result and the |z| statistics, so the output array can
    be consumed directly as the next conv's zero-padded input.
    """
    offs = tuple(ky * w_pad + kx for ky in range(3) for kx in range(3))

    def compute(xa_ref, xb_ref, w_ref, b_ref, mask_ref, y_ref, st_ref,
                sa_ref=None, sb_ref=None):
        # tile + right halo: contiguous flat-spatial columns (bf16)
        win = jnp.concatenate([xa_ref[...], xb_ref[:, :2 * guard]], axis=1)
        if fuse_bn_relu:
            # radial-BN1 + CReLU on the UN-EXPANDED input; rsqrt -> EUP slot.
            wf = win.astype(jnp.float32)
            mag2 = wf[:c_in] * wf[:c_in] + wf[c_in:] * wf[c_in:]
            scale = sa_ref[...] + sb_ref[...] * lax.rsqrt(
                jnp.maximum(mag2, _MAG_EPS2))
            scale2 = jnp.concatenate([scale, scale], axis=0)
            win = jnp.maximum(wf * scale2, 0.0).astype(jnp.bfloat16)
        # in-register tap gather -> one deep matmul (K = 9 * 2 * c_in)
        xcol = jnp.concatenate([win[:, o:o + tile_m] for o in offs], axis=0)
        acc = jnp.dot(w_ref[...], xcol, preferred_element_type=jnp.float32)
        acc = (acc + b_ref[...]) * mask_ref[...]
        yr, yi = acc[:c_out], acc[c_out:]
        mag2o = yr * yr + yi * yi
        mago = jnp.sqrt(mag2o)
        # packed per-block radial-BN statistics: one tiny output per tile.
        st_ref[0, 0] = jnp.concatenate(
            [jnp.sum(mago, axis=1, keepdims=True),
             jnp.sum(mag2o, axis=1, keepdims=True)], axis=1)
        y_ref[0] = acc.astype(y_ref.dtype)

    if fuse_bn_relu:
        def kernel(xa, xb, w, b, mask, sa, sb, y, st):
            compute(xa, xb, w, b, mask, y, st, sa, sb)
    else:
        def kernel(xa, xb, w, b, mask, y, st):
            compute(xa, xb, w, b, mask, y, st)
    return kernel


def _bn_crelu_kernel(y_ref, sa_ref, sb_ref, o_ref):
    """Final radial-BN2 + CReLU epilogue; single lane-dense full-block store."""
    y = y_ref[0]                                     # (2C, tile_m) f32
    c = sa_ref.shape[0]
    yr, yi = y[:c], y[c:]
    scale = sa_ref[...] + sb_ref[...] * lax.rsqrt(
        jnp.maximum(yr * yr + yi * yi, _MAG_EPS2))
    scale2 = jnp.concatenate([scale, scale], axis=0)
    o_ref[0] = jnp.maximum(y * scale2, 0.0)


# ----------------------------------------------------------------------------
# pallas_call wrappers
# ----------------------------------------------------------------------------
def _mosaic_params(block_bytes):
    # derive the VMEM budget from the actual (double-buffered) block sizes.
    vmem = int(min(max(2 * block_bytes + (16 << 20), 32 << 20), 100 << 20))
    return pltpu.CompilerParams(
        dimension_semantics=("parallel", "parallel"),
        vmem_limit_bytes=vmem)


def _conv_stage(x_ext, w_blk, b_col, mask, c_in, c_out, w_pad, tile_m, tile_b,
                guard, out_dtype, sa=None, sb=None):
    n, k2, _ = x_ext.shape
    l_out = mask.shape[1]
    t = l_out // tile_m
    tc = 2 * c_out
    ratio = tile_m // tile_b
    fuse = sa is not None
    kernel = _make_conv_kernel(c_in, c_out, w_pad, tile_m, guard, fuse)

    in_specs = [
        pl.BlockSpec((None, k2, tile_m), lambda i, j: (i, 0, j)),
        pl.BlockSpec((None, k2, tile_b), lambda i, j: (i, 0, (j + 1) * ratio)),
        pl.BlockSpec((tc, 9 * k2), lambda i, j: (0, 0)),
        pl.BlockSpec((tc, 1), lambda i, j: (0, 0)),
        pl.BlockSpec((1, tile_m), lambda i, j: (0, j)),
    ]
    args = [x_ext, x_ext, w_blk, b_col, mask]
    if fuse:
        in_specs += [pl.BlockSpec((c_in, 1), lambda i, j: (0, 0)),
                     pl.BlockSpec((c_in, 1), lambda i, j: (0, 0))]
        args += [sa, sb]

    out_item = np.dtype(out_dtype).itemsize
    blk_bytes = (k2 * (tile_m + tile_b) * 2            # input tile + halo (bf16)
                 + tc * 9 * k2 * 2                     # block weight (bf16)
                 + (tc + tile_m + 4 * c_out) * 4       # bias, mask, scales, stats
                 + tc * tile_m * out_item)             # output tile

    return pl.pallas_call(
        kernel,
        out_shape=(jax.ShapeDtypeStruct((n, tc, l_out), out_dtype),
                   jax.ShapeDtypeStruct((n, t, c_out, 2), jnp.float32)),
        grid=(n, t),
        in_specs=in_specs,
        out_specs=(pl.BlockSpec((1, tc, tile_m), lambda i, j: (i, 0, j)),
                   pl.BlockSpec((1, 1, c_out, 2), lambda i, j: (i, j, 0, 0))),
        compiler_params=_mosaic_params(blk_bytes),
    )(*args)


def _bn_crelu(y, sa, sb, tile_m):
    n, tc, l = y.shape
    t = l // tile_m
    c = tc // 2
    blk_bytes = 2 * tc * tile_m * 4 + 2 * c * 4
    return pl.pallas_call(
        _bn_crelu_kernel,
        out_shape=jax.ShapeDtypeStruct((n, tc, l), jnp.float32),
        grid=(n, t),
        in_specs=[pl.BlockSpec((1, tc, tile_m), lambda i, j: (i, 0, j)),
                  pl.BlockSpec((c, 1), lambda i, j: (0, 0)),
                  pl.BlockSpec((c, 1), lambda i, j: (0, 0))],
        out_specs=pl.BlockSpec((1, tc, tile_m), lambda i, j: (i, 0, j)),
        compiler_params=_mosaic_params(blk_bytes),
    )(y, sa, sb)


# ----------------------------------------------------------------------------
# JAX glue (layout plumbing + tiny per-channel reductions only)
# ----------------------------------------------------------------------------
def _pick_tile(l_image, n_batch, min_blocks=8):
    """Largest lane-aligned tile that still yields enough grid blocks for
    pipelining / v7x's two TensorCores; falls back to 128."""
    for cand in (2048, 1024, 512, 256, 128):
        if n_batch * _cdiv(l_image, cand) >= min_blocks:
            return cand
    return 128


def _interior_mask(lead, l_out, h, w):
    """1.0 at flat positions that are interior pixels of the (H+2, W+2)
    zero-padded image placed at flat offset `lead`, else 0.0."""
    hp, wp = h + 2, w + 2
    q = np.arange(l_out, dtype=np.int64)
    p = q - lead
    row, col = p // wp, p % wp
    valid = ((p >= 0) & (p < hp * wp) &
             (row >= 1) & (row <= h) & (col >= 1) & (col <= w))
    return jnp.asarray(valid.astype(np.float32).reshape(1, l_out))


def _to_ext_layout(x2c, h, w, base, l_total):
    """(N, 2C, H, W) -> (N, 2C, l_total) bf16: zero-pad spatially by 1, flatten,
    place the padded image at flat offset `base`, zeros elsewhere."""
    n, c2 = x2c.shape[0], x2c.shape[1]
    mp = (h + 2) * (w + 2)
    xp = jnp.pad(x2c, ((0, 0), (0, 0), (1, 1), (1, 1))).reshape(n, c2, mp)
    xp = jnp.pad(xp, ((0, 0), (0, 0), (base, l_total - base - mp)))
    return xp.astype(jnp.bfloat16)


def _block_weight(w_re, w_im):
    """(Cout, Cin, 3, 3) x2 -> (2*Cout, 9*2*Cin) bf16 block-complex weight,
    tap-major columns matching the in-kernel tap gather order."""
    blocks = []
    for ky in range(3):
        for kx in range(3):
            wr, wi = w_re[:, :, ky, kx], w_im[:, :, ky, kx]
            blocks.append(jnp.concatenate(
                [jnp.concatenate([wr, -wi], axis=1),
                 jnp.concatenate([wi, wr], axis=1)], axis=0))
    return jnp.concatenate(blocks, axis=1).astype(jnp.bfloat16)


def _bn_scale_from_sums(stats, gamma, beta, count):
    """Per-channel radial-BN affine (a, b): |z| -> a*|z| + b (training stats)."""
    s = jnp.sum(stats, axis=(0, 1))                  # (Cout, 2)
    mean = s[:, 0] / count
    ex2 = s[:, 1] / count
    var = jnp.maximum(ex2 - mean * mean, 0.0)
    a = gamma * lax.rsqrt(var + _BN_EPS)
    b = beta - mean * a
    return a, b


def inconv_forward(x, params):
    """x: (N, Cin, H, W, 2) float32 (PyTorch complex-last layout).
    Returns (N, Cout, H, W, 2) float32."""
    n, cin, h, w, _ = x.shape
    cout = params["w_re1"].shape[0]
    h_pad, w_pad = h + 2, w + 2
    mp = h_pad * w_pad
    guard = w_pad + 1                        # max |flat tap offset|
    tile_b = _round_up(2 * guard, 128)       # halo block width
    tile_m = _round_up(max(_pick_tile(mp, n), tile_b), tile_b)

    # flattened-padded-spatial lengths; conv1's output doubles as conv2's
    # input (image starts at flat offset `lead1`, halo/tail columns are
    # exactly zero because the kernels mask non-interior positions).
    lead2 = 0
    l_out2 = _round_up(lead2 + mp, tile_m)
    lead1 = guard
    l_out1 = _round_up(max(lead1 + mp, l_out2 + tile_b), tile_m)
    l_in1 = l_out1 + tile_b

    mask1 = _interior_mask(lead1, l_out1, h, w)
    mask2 = _interior_mask(lead2, l_out2, h, w)

    # ---- stage 1: complex conv1 (+ per-block radial-BN1 statistics) --------
    x2c = jnp.concatenate([x[..., 0], x[..., 1]], axis=1)     # (N, 2Cin, H, W)
    x_ext = _to_ext_layout(x2c, h, w, lead1 + guard, l_in1)
    w_blk1 = _block_weight(params["w_re1"], params["w_im1"])
    b1 = jnp.concatenate([params["b_re1"], params["b_im1"]]).reshape(2 * cout, 1)
    y1, st1 = _conv_stage(x_ext, w_blk1, b1, mask1, cin, cout, w_pad,
                          tile_m, tile_b, guard, jnp.bfloat16)
    a1, c1 = _bn_scale_from_sums(st1, params["gamma1"], params["beta1"],
                                 n * h * w)

    # ---- stage 2: fused (radial-BN1 + CReLU) prologue + complex conv2 ------
    w_blk2 = _block_weight(params["w_re2"], params["w_im2"])
    b2 = jnp.concatenate([params["b_re2"], params["b_im2"]]).reshape(2 * cout, 1)
    y2, st2 = _conv_stage(y1, w_blk2, b2, mask2, cout, cout, w_pad,
                          tile_m, tile_b, guard, jnp.float32,
                          sa=a1.reshape(cout, 1), sb=c1.reshape(cout, 1))
    a2, c2 = _bn_scale_from_sums(st2, params["gamma2"], params["beta2"],
                                 n * h * w)

    # ---- stage 3: radial-BN2 + CReLU epilogue -------------------------------
    y3 = _bn_crelu(y2, a2.reshape(cout, 1), c2.reshape(cout, 1), tile_m)

    # unpack interior pixels and restore the PyTorch complex-last layout
    # (kept for module-output compatibility; defer in a full network).
    y3 = y3[:, :, :mp].reshape(n, 2 * cout, h_pad, w_pad)[:, :, 1:-1, 1:-1]
    return jnp.stack([y3[:, :cout], y3[:, cout:]], axis=-1)


# ----------------------------------------------------------------------------
# params / reference / demo
# ----------------------------------------------------------------------------
def init_inconv_params(key, in_ch, out_ch):
    ks = jax.random.split(key, 8)

    def conv_w(k, cout, cin):
        fan_in = cin * 9
        return jax.random.normal(k, (cout, cin, 3, 3), jnp.float32) / jnp.sqrt(
            fan_in)

    return {
        "w_re1": conv_w(ks[0], out_ch, in_ch),
        "w_im1": conv_w(ks[1], out_ch, in_ch),
        "b_re1": 0.01 * jax.random.normal(ks[2], (out_ch,), jnp.float32),
        "b_im1": 0.01 * jax.random.normal(ks[3], (out_ch,), jnp.float32),
        "gamma1": jnp.ones((out_ch,), jnp.float32),
        "beta1": jnp.zeros((out_ch,), jnp.float32),
        "w_re2": conv_w(ks[4], out_ch, out_ch),
        "w_im2": conv_w(ks[5], out_ch, out_ch),
        "b_re2": 0.01 * jax.random.normal(ks[6], (out_ch,), jnp.float32),
        "b_im2": 0.01 * jax.random.normal(ks[7], (out_ch,), jnp.float32),
        "gamma2": jnp.ones((out_ch,), jnp.float32),
        "beta2": jnp.zeros((out_ch,), jnp.float32),
    }


def _reference_forward(x, params):
    """Pure-JAX reference mirroring the kernel's bf16 rounding points."""
    f32 = jnp.float32

    def rb(v):
        return v.astype(jnp.bfloat16).astype(f32)

    def conv2d(xx, ww):
        return lax.conv_general_dilated(
            xx, ww, (1, 1), ((1, 1), (1, 1)),
            dimension_numbers=("NCHW", "OIHW", "NCHW"),
            precision=lax.Precision.HIGHEST)

    def cconv(xr, xi, wre, wim, bre, bim):
        wre, wim = rb(wre), rb(wim)
        yr = conv2d(xr, wre) - conv2d(xi, wim) + bre[None, :, None, None]
        yi = conv2d(xr, wim) + conv2d(xi, wre) + bim[None, :, None, None]
        return yr, yi

    def bn_ab(yr, yi, gamma, beta):
        mag = jnp.sqrt(yr * yr + yi * yi)
        mean = jnp.mean(mag, axis=(0, 2, 3))
        var = jnp.maximum(jnp.mean(mag * mag, axis=(0, 2, 3)) - mean * mean, 0.0)
        a = gamma * lax.rsqrt(var + _BN_EPS)
        b = beta - mean * a
        return a, b

    def bn_crelu(yr, yi, a, b):
        scale = (a[None, :, None, None] + b[None, :, None, None] *
                 lax.rsqrt(jnp.maximum(yr * yr + yi * yi, _MAG_EPS2)))
        return jnp.maximum(yr * scale, 0.0), jnp.maximum(yi * scale, 0.0)

    xr, xi = rb(x[..., 0]), rb(x[..., 1])
    y1r, y1i = cconv(xr, xi, params["w_re1"], params["w_im1"],
                     params["b_re1"], params["b_im1"])
    a1, b1 = bn_ab(y1r, y1i, params["gamma1"], params["beta1"])
    z1r, z1i = bn_crelu(rb(y1r), rb(y1i), a1, b1)
    z1r, z1i = rb(z1r), rb(z1i)
    y2r, y2i = cconv(z1r, z1i, params["w_re2"], params["w_im2"],
                     params["b_re2"], params["b_im2"])
    a2, b2 = bn_ab(y2r, y2i, params["gamma2"], params["beta2"])
    o_r, o_i = bn_crelu(y2r, y2i, a2, b2)
    return jnp.stack([o_r, o_i], axis=-1)


if __name__ == "__main__":
    N, IN_CH, OUT_CH, H, W = 2, 4, 8, 16, 16

    key = jax.random.PRNGKey(0)
    kx, kp = jax.random.split(key)
    # PyTorch-style complex input: (N, C, H, W, 2) with last dim = (re, im).
    x = jax.random.normal(kx, (N, IN_CH, H, W, 2), jnp.float32)
    params = init_inconv_params(kp, IN_CH, OUT_CH)

    fwd = jax.jit(inconv_forward)
    out = fwd(x, params)
    jax.block_until_ready(out)

    assert out.shape == (N, OUT_CH, H, W, 2)
    assert bool(jnp.all(jnp.isfinite(out)))

    ref = jax.jit(_reference_forward)(x, params)
    err = float(jnp.max(jnp.abs(out - ref)))
    assert err < 5e-2, f"max abs error vs reference: {err}"
    print("KERNEL_OK")
</pallas_src>

<mosaic_0001>
module attributes {stable_mosaic.version = 11 : i64} {
  func.func @kernel(%arg0: i32, %arg1: i32, %arg2: memref<1x8x128xbf16, #tpu.memory_space<vmem>>, %arg3: memref<1x8x128xbf16, #tpu.memory_space<vmem>>, %arg4: memref<16x72xbf16, #tpu.memory_space<vmem>>, %arg5: memref<16x1xf32, #tpu.memory_space<vmem>>, %arg6: memref<1x128xf32, #tpu.memory_space<vmem>>, %arg7: memref<1x16x128xbf16, #tpu.memory_space<vmem>>, %arg8: memref<1x1x8x2xf32, #tpu.memory_space<vmem>>) attributes {dimension_semantics = [#tpu.dimension_semantics<parallel>, #tpu.dimension_semantics<parallel>], iteration_bounds = array<i64: 2, 4>, scalar_prefetch = 0 : i64, scratch_operands = 0 : i64, tpu.core_type = #tpu.core_type<tc>, window_params = [{transform_indices = @transform_0, window_bounds = array<i64: 1, 8, 128>}, {transform_indices = @transform_1, window_bounds = array<i64: 1, 8, 128>}, {pipeline_mode = #tpu.pipeline_mode<synchronous>, transform_indices = @transform_2, window_bounds = array<i64: 16, 72>}, {pipeline_mode = #tpu.pipeline_mode<synchronous>, transform_indices = @transform_3, window_bounds = array<i64: 16, 1>}, {transform_indices = @transform_4, window_bounds = array<i64: 1, 128>}, {transform_indices = @transform_5, window_bounds = array<i64: 1, 16, 128>}, {transform_indices = @transform_6, window_bounds = array<i64: 1, 1, 8, 2>}]} {
    %c0 = arith.constant 0 : index
    %c0_0 = arith.constant 0 : index
    %c0_1 = arith.constant 0 : index
    %0 = vector.load %arg2[%c0, %c0_0, %c0_1] : memref<1x8x128xbf16, #tpu.memory_space<vmem>>, vector<1x8x128xbf16>
    %1 = vector.shape_cast %0 : vector<1x8x128xbf16> to vector<8x128xbf16>
    %c0_2 = arith.constant 0 : index
    %c0_3 = arith.constant 0 : index
    %c0_4 = arith.constant 0 : index
    %2 = vector.load %arg3[%c0_2, %c0_3, %c0_4] : memref<1x8x128xbf16, #tpu.memory_space<vmem>>, vector<1x8x38xbf16>
    %3 = vector.shape_cast %2 : vector<1x8x38xbf16> to vector<8x38xbf16>
    %4 = tpu.concatenate %1, %3 in 1 : vector<8x128xbf16>, vector<8x38xbf16> -> vector<8x166xbf16>
    %5 = vector.extract_strided_slice %4 {offsets = [0, 0], sizes = [8, 128], strides = [1, 1]} : vector<8x166xbf16> to vector<8x128xbf16>
    %6 = vector.extract_strided_slice %4 {offsets = [0, 1], sizes = [8, 128], strides = [1, 1]} : vector<8x166xbf16> to vector<8x128xbf16>
    %7 = vector.extract_strided_slice %4 {offsets = [0, 2], sizes = [8, 128], strides = [1, 1]} : vector<8x166xbf16> to vector<8x128xbf16>
    %8 = vector.extract_strided_slice %4 {offsets = [0, 18], sizes = [8, 128], strides = [1, 1]} : vector<8x166xbf16> to vector<8x128xbf16>
    %9 = vector.extract_strided_slice %4 {offsets = [0, 19], sizes = [8, 128], strides = [1, 1]} : vector<8x166xbf16> to vector<8x128xbf16>
    %10 = vector.extract_strided_slice %4 {offsets = [0, 20], sizes = [8, 128], strides = [1, 1]} : vector<8x166xbf16> to vector<8x128xbf16>
    %11 = vector.extract_strided_slice %4 {offsets = [0, 36], sizes = [8, 128], strides = [1, 1]} : vector<8x166xbf16> to vector<8x128xbf16>
    %12 = vector.extract_strided_slice %4 {offsets = [0, 37], sizes = [8, 128], strides = [1, 1]} : vector<8x166xbf16> to vector<8x128xbf16>
    %13 = vector.extract_strided_slice %4 {offsets = [0, 38], sizes = [8, 128], strides = [1, 1]} : vector<8x166xbf16> to vector<8x128xbf16>
    %14 = tpu.concatenate %5, %6, %7, %8, %9, %10, %11, %12, %13 in 0 : vector<8x128xbf16>, vector<8x128xbf16>, vector<8x128xbf16>, vector<8x128xbf16>, vector<8x128xbf16>, vector<8x128xbf16>, vector<8x128xbf16>, vector<8x128xbf16>, vector<8x128xbf16> -> vector<72x128xbf16>
    %c0_5 = arith.constant 0 : index
    %c0_6 = arith.constant 0 : index
    %15 = vector.load %arg4[%c0_5, %c0_6] : memref<16x72xbf16, #tpu.memory_space<vmem>>, vector<16x72xbf16>
    %cst = arith.constant dense<0.000000e+00> : vector<16x128xf32>
    %16 = tpu.matmul %15, %14, %cst {dimension_numbers = #tpu.dot_dimension_numbers<[1], [0], [0], [1], [0, 0, 1, 1], [], []>} : vector<16x72xbf16>, vector<72x128xbf16>, vector<16x128xf32> -> vector<16x128xf32>
    %c0_7 = arith.constant 0 : index
    %c0_8 = arith.constant 0 : index
    %17 = vector.load %arg5[%c0_7, %c0_8] : memref<16x1xf32, #tpu.memory_space<vmem>>, vector<16x1xf32>
    %18 = vector.broadcast %17 : vector<16x1xf32> to vector<16x128xf32>
    %19 = arith.addf %16, %18 : vector<16x128xf32>
    %c0_9 = arith.constant 0 : index
    %c0_10 = arith.constant 0 : index
    %20 = vector.load %arg6[%c0_9, %c0_10] : memref<1x128xf32, #tpu.memory_space<vmem>>, vector<1x128xf32>
    %21 = vector.broadcast %20 : vector<1x128xf32> to vector<16x128xf32>
    %22 = arith.mulf %19, %21 : vector<16x128xf32>
    %23 = vector.extract_strided_slice %22 {offsets = [0, 0], sizes = [8, 128], strides = [1, 1]} : vector<16x128xf32> to vector<8x128xf32>
    %24 = vector.extract_strided_slice %22 {offsets = [8, 0], sizes = [8, 128], strides = [1, 1]} : vector<16x128xf32> to vector<8x128xf32>
    %25 = arith.mulf %23, %23 : vector<8x128xf32>
    %26 = arith.mulf %24, %24 : vector<8x128xf32>
    %27 = arith.addf %25, %26 : vector<8x128xf32>
    %28 = math.sqrt %27 : vector<8x128xf32>
    %cst_11 = arith.constant dense<0.000000e+00> : vector<8xf32>
    %29 = vector.multi_reduction <add>, %28, %cst_11 [1] : vector<8x128xf32> to vector<8xf32>
    %30 = vector.shape_cast %29 : vector<8xf32> to vector<8x1xf32>
    %cst_12 = arith.constant dense<0.000000e+00> : vector<8xf32>
    %31 = vector.multi_reduction <add>, %27, %cst_12 [1] : vector<8x128xf32> to vector<8xf32>
    %32 = vector.shape_cast %31 : vector<8xf32> to vector<8x1xf32>
    %33 = tpu.concatenate %30, %32 in 1 : vector<8x1xf32>, vector<8x1xf32> -> vector<8x2xf32>
    %c0_13 = arith.constant 0 : index
    %c0_14 = arith.constant 0 : index
    %c0_15 = arith.constant 0 : index
    %c0_16 = arith.constant 0 : index
    %34 = vector.load %arg8[%c0_13, %c0_14, %c0_15, %c0_16] : memref<1x1x8x2xf32, #tpu.memory_space<vmem>>, vector<1x1x8x2xf32>
    %35 = vector.shape_cast %34 : vector<1x1x8x2xf32> to vector<8x2xf32>
    %36 = vector.shape_cast %33 : vector<8x2xf32> to vector<1x1x8x2xf32>
    tpu.vector_store %arg8[%c0_13, %c0_14, %c0_15, %c0_16], %36 {strides = array<i32>} : memref<1x1x8x2xf32, #tpu.memory_space<vmem>>, vector<1x1x8x2xf32>,
    %37 = arith.truncf %22 : vector<16x128xf32> to vector<16x128xbf16>
    %c0_17 = arith.constant 0 : index
    %c0_18 = arith.constant 0 : index
    %c0_19 = arith.constant 0 : index
    %38 = vector.load %arg7[%c0_17, %c0_18, %c0_19] : memref<1x16x128xbf16, #tpu.memory_space<vmem>>, vector<1x16x128xbf16>
    %39 = vector.shape_cast %38 : vector<1x16x128xbf16> to vector<16x128xbf16>
    %40 = vector.shape_cast %37 : vector<16x128xbf16> to vector<1x16x128xbf16>
    tpu.vector_store %arg7[%c0_17, %c0_18, %c0_19], %40 {strides = array<i32>} : memref<1x16x128xbf16, #tpu.memory_space<vmem>>, vector<1x16x128xbf16>,
    return
  }
  func.func @transform_0(%arg0: i32, %arg1: i32) -> (i32, i32, i32) {
    %c0_i32 = arith.constant 0 : i32
    %c0_i32_0 = arith.constant 0 : i32
    return %arg0, %c0_i32, %arg1 : i32, i32, i32
  }
  func.func @transform_1(%arg0: i32, %arg1: i32) -> (i32, i32, i32) {
    %c1_i32 = arith.constant 1 : i32
    %0 = arith.addi %arg1, %c1_i32 : i32
    %c1_i32_0 = arith.constant 1 : i32
    %1 = arith.muli %0, %c1_i32_0 : i32
    %c0_i32 = arith.constant 0 : i32
    %c0_i32_1 = arith.constant 0 : i32
    return %arg0, %c0_i32, %1 : i32, i32, i32
  }
  func.func @transform_2(%arg0: i32, %arg1: i32) -> (i32, i32) {
    %c0_i32 = arith.constant 0 : i32
    %c0_i32_0 = arith.constant 0 : i32
    %c0_i32_1 = arith.constant 0 : i32
    return %c0_i32, %c0_i32_0 : i32, i32
  }
  func.func @transform_3(%arg0: i32, %arg1: i32) -> (i32, i32) {
    %c0_i32 = arith.constant 0 : i32
    %c0_i32_0 = arith.constant 0 : i32
    %c0_i32_1 = arith.constant 0 : i32
    return %c0_i32, %c0_i32_0 : i32, i32
  }
  func.func @transform_4(%arg0: i32, %arg1: i32) -> (i32, i32) {
    %c0_i32 = arith.constant 0 : i32
    %c0_i32_0 = arith.constant 0 : i32
    return %c0_i32, %arg1 : i32, i32
  }
  func.func @transform_5(%arg0: i32, %arg1: i32) -> (i32, i32, i32) {
    %c0_i32 = arith.constant 0 : i32
    %c0_i32_0 = arith.constant 0 : i32
    return %arg0, %c0_i32, %arg1 : i32, i32, i32
  }
  func.func @transform_6(%arg0: i32, %arg1: i32) -> (i32, i32, i32, i32) {
    %c0_i32 = arith.constant 0 : i32
    %c0_i32_0 = arith.constant 0 : i32
    %c0_i32_1 = arith.constant 0 : i32
    return %arg0, %arg1, %c0_i32, %c0_i32_0 : i32, i32, i32, i32
  }
}

module attributes {stable_mosaic.version = 11 : i64} {
  func.func @_bn_crelu_kernel(%arg0: i32, %arg1: i32, %arg2: memref<1x16x128xf32, #tpu.memory_space<vmem>>, %arg3: memref<8x1xf32, #tpu.memory_space<vmem>>, %arg4: memref<8x1xf32, #tpu.memory_space<vmem>>, %arg5: memref<1x16x128xf32, #tpu.memory_space<vmem>>) attributes {dimension_semantics = [#tpu.dimension_semantics<parallel>, #tpu.dimension_semantics<parallel>], iteration_bounds = array<i64: 2, 3>, scalar_prefetch = 0 : i64, scratch_operands = 0 : i64, tpu.core_type = #tpu.core_type<tc>, window_params = [{transform_indices = @transform_0, window_bounds = array<i64: 1, 16, 128>}, {pipeline_mode = #tpu.pipeline_mode<synchronous>, transform_indices = @transform_1, window_bounds = array<i64: 8, 1>}, {pipeline_mode = #tpu.pipeline_mode<synchronous>, transform_indices = @transform_2, window_bounds = array<i64: 8, 1>}, {transform_indices = @transform_3, window_bounds = array<i64: 1, 16, 128>}]} {
    %c0 = arith.constant 0 : index
    %c0_0 = arith.constant 0 : index
    %c0_1 = arith.constant 0 : index
    %0 = vector.load %arg2[%c0, %c0_0, %c0_1] : memref<1x16x128xf32, #tpu.memory_space<vmem>>, vector<1x16x128xf32>
    %1 = vector.shape_cast %0 : vector<1x16x128xf32> to vector<16x128xf32>
    %2 = vector.extract_strided_slice %1 {offsets = [0, 0], sizes = [8, 128], strides = [1, 1]} : vector<16x128xf32> to vector<8x128xf32>
    %3 = vector.extract_strided_slice %1 {offsets = [8, 0], sizes = [8, 128], strides = [1, 1]} : vector<16x128xf32> to vector<8x128xf32>
    %c0_2 = arith.constant 0 : index
    %c0_3 = arith.constant 0 : index
    %4 = vector.load %arg3[%c0_2, %c0_3] : memref<8x1xf32, #tpu.memory_space<vmem>>, vector<8x1xf32>
    %c0_4 = arith.constant 0 : index
    %c0_5 = arith.constant 0 : index
    %5 = vector.load %arg4[%c0_4, %c0_5] : memref<8x1xf32, #tpu.memory_space<vmem>>, vector<8x1xf32>
    %6 = arith.mulf %2, %2 : vector<8x128xf32>
    %7 = arith.mulf %3, %3 : vector<8x128xf32>
    %8 = arith.addf %6, %7 : vector<8x128xf32>
    %cst = arith.constant 1.000000e-16 : f32
    %9 = vector.broadcast %cst : f32 to vector<8x128xf32>
    %10 = arith.maximumf %8, %9 : vector<8x128xf32>
    %11 = math.rsqrt %10 : vector<8x128xf32>
    %12 = vector.broadcast %5 : vector<8x1xf32> to vector<8x128xf32>
    %13 = arith.mulf %12, %11 : vector<8x128xf32>
    %14 = vector.broadcast %4 : vector<8x1xf32> to vector<8x128xf32>
    %15 = arith.addf %14, %13 : vector<8x128xf32>
    %16 = tpu.concatenate %15, %15 in 0 : vector<8x128xf32>, vector<8x128xf32> -> vector<16x128xf32>
    %17 = arith.mulf %1, %16 : vector<16x128xf32>
    %cst_6 = arith.constant 0.000000e+00 : f32
    %18 = vector.broadcast %cst_6 : f32 to vector<16x128xf32>
    %19 = arith.maximumf %17, %18 : vector<16x128xf32>
    %c0_7 = arith.constant 0 : index
    %c0_8 = arith.constant 0 : index
    %c0_9 = arith.constant 0 : index
    %20 = vector.load %arg5[%c0_7, %c0_8, %c0_9] : memref<1x16x128xf32, #tpu.memory_space<vmem>>, vector<1x16x128xf32>
    %21 = vector.shape_cast %20 : vector<1x16x128xf32> to vector<16x128xf32>
    %22 = vector.shape_cast %19 : vector<16x128xf32> to vector<1x16x128xf32>
    tpu.vector_store %arg5[%c0_7, %c0_8, %c0_9], %22 {strides = array<i32>} : memref<1x16x128xf32, #tpu.memory_space<vmem>>, vector<1x16x128xf32>,
    return
  }
  func.func @transform_0(%arg0: i32, %arg1: i32) -> (i32, i32, i32) {
    %c0_i32 = arith.constant 0 : i32
    %c0_i32_0 = arith.constant 0 : i32
    return %arg0, %c0_i32, %arg1 : i32, i32, i32
  }
  func.func @transform_1(%arg0: i32, %arg1: i32) -> (i32, i32) {
    %c0_i32 = arith.constant 0 : i32
    %c0_i32_0 = arith.constant 0 : i32
    %c0_i32_1 = arith.constant 0 : i32
    return %c0_i32, %c0_i32_0 : i32, i32
  }
  func.func @transform_2(%arg0: i32, %arg1: i32) -> (i32, i32) {
    %c0_i32 = arith.constant 0 : i32
    %c0_i32_0 = arith.constant 0 : i32
    %c0_i32_1 = arith.constant 0 : i32
    return %c0_i32, %c0_i32_0 : i32, i32
  }
  func.func @transform_3(%arg0: i32, %arg1: i32) -> (i32, i32, i32) {
    %c0_i32 = arith.constant 0 : i32
    %c0_i32_0 = arith.constant 0 : i32
    return %arg0, %c0_i32, %arg1 : i32, i32, i32
  }
}

module attributes {stable_mosaic.version = 11 : i64} {
  func.func @kernel(%arg0: i32, %arg1: i32, %arg2: memref<1x16x128xbf16, #tpu.memory_space<vmem>>, %arg3: memref<1x16x128xbf16, #tpu.memory_space<vmem>>, %arg4: memref<16x144xbf16, #tpu.memory_space<vmem>>, %arg5: memref<16x1xf32, #tpu.memory_space<vmem>>, %arg6: memref<1x128xf32, #tpu.memory_space<vmem>>, %arg7: memref<8x1xf32, #tpu.memory_space<vmem>>, %arg8: memref<8x1xf32, #tpu.memory_space<vmem>>, %arg9: memref<1x16x128xf32, #tpu.memory_space<vmem>>, %arg10: memref<1x1x8x2xf32, #tpu.memory_space<vmem>>) attributes {dimension_semantics = [#tpu.dimension_semantics<parallel>, #tpu.dimension_semantics<parallel>], iteration_bounds = array<i64: 2, 3>, scalar_prefetch = 0 : i64, scratch_operands = 0 : i64, tpu.core_type = #tpu.core_type<tc>, window_params = [{transform_indices = @transform_0, window_bounds = array<i64: 1, 16, 128>}, {transform_indices = @transform_1, window_bounds = array<i64: 1, 16, 128>}, {pipeline_mode = #tpu.pipeline_mode<synchronous>, transform_indices = @transform_2, window_bounds = array<i64: 16, 144>}, {pipeline_mode = #tpu.pipeline_mode<synchronous>, transform_indices = @transform_3, window_bounds = array<i64: 16, 1>}, {transform_indices = @transform_4, window_bounds = array<i64: 1, 128>}, {pipeline_mode = #tpu.pipeline_mode<synchronous>, transform_indices = @transform_5, window_bounds = array<i64: 8, 1>}, {pipeline_mode = #tpu.pipeline_mode<synchronous>, transform_indices = @transform_6, window_bounds = array<i64: 8, 1>}, {transform_indices = @transform_7, window_bounds = array<i64: 1, 16, 128>}, {transform_indices = @transform_8, window_bounds = array<i64: 1, 1, 8, 2>}]} {
    %c0 = arith.constant 0 : index
    %c0_0 = arith.constant 0 : index
    %c0_1 = arith.constant 0 : index
    %0 = vector.load %arg2[%c0, %c0_0, %c0_1] : memref<1x16x128xbf16, #tpu.memory_space<vmem>>, vector<1x16x128xbf16>
    %1 = vector.shape_cast %0 : vector<1x16x128xbf16> to vector<16x128xbf16>
    %c0_2 = arith.constant 0 : index
    %c0_3 = arith.constant 0 : index
    %c0_4 = arith.constant 0 : index
    %2 = vector.load %arg3[%c0_2, %c0_3, %c0_4] : memref<1x16x128xbf16, #tpu.memory_space<vmem>>, vector<1x16x38xbf16>
    %3 = vector.shape_cast %2 : vector<1x16x38xbf16> to vector<16x38xbf16>
    %4 = tpu.concatenate %1, %3 in 1 : vector<16x128xbf16>, vector<16x38xbf16> -> vector<16x166xbf16>
    %5 = arith.extf %4 : vector<16x166xbf16> to vector<16x166xf32>
    %6 = vector.extract_strided_slice %5 {offsets = [0, 0], sizes = [8, 166], strides = [1, 1]} : vector<16x166xf32> to vector<8x166xf32>
    %7 = vector.extract_strided_slice %5 {offsets = [0, 0], sizes = [8, 166], strides = [1, 1]} : vector<16x166xf32> to vector<8x166xf32>
    %8 = arith.mulf %6, %7 : vector<8x166xf32>
    %9 = vector.extract_strided_slice %5 {offsets = [8, 0], sizes = [8, 166], strides = [1, 1]} : vector<16x166xf32> to vector<8x166xf32>
    %10 = vector.extract_strided_slice %5 {offsets = [8, 0], sizes = [8, 166], strides = [1, 1]} : vector<16x166xf32> to vector<8x166xf32>
    %11 = arith.mulf %9, %10 : vector<8x166xf32>
    %12 = arith.addf %8, %11 : vector<8x166xf32>
    %c0_5 = arith.constant 0 : index
    %c0_6 = arith.constant 0 : index
    %13 = vector.load %arg7[%c0_5, %c0_6] : memref<8x1xf32, #tpu.memory_space<vmem>>, vector<8x1xf32>
    %c0_7 = arith.constant 0 : index
    %c0_8 = arith.constant 0 : index
    %14 = vector.load %arg8[%c0_7, %c0_8] : memref<8x1xf32, #tpu.memory_space<vmem>>, vector<8x1xf32>
    %cst = arith.constant 1.000000e-16 : f32
    %15 = vector.broadcast %cst : f32 to vector<8x166xf32>
    %16 = arith.maximumf %12, %15 : vector<8x166xf32>
    %17 = math.rsqrt %16 : vector<8x166xf32>
    %18 = vector.broadcast %14 : vector<8x1xf32> to vector<8x166xf32>
    %19 = arith.mulf %18, %17 : vector<8x166xf32>
    %20 = vector.broadcast %13 : vector<8x1xf32> to vector<8x166xf32>
    %21 = arith.addf %20, %19 : vector<8x166xf32>
    %22 = tpu.concatenate %21, %21 in 0 : vector<8x166xf32>, vector<8x166xf32> -> vector<16x166xf32>
    %23 = arith.mulf %5, %22 : vector<16x166xf32>
    %cst_9 = arith.constant 0.000000e+00 : f32
    %24 = vector.broadcast %cst_9 : f32 to vector<16x166xf32>
    %25 = arith.maximumf %23, %24 : vector<16x166xf32>
    %26 = arith.truncf %25 : vector<16x166xf32> to vector<16x166xbf16>
    %27 = vector.extract_strided_slice %26 {offsets = [0, 0], sizes = [16, 128], strides = [1, 1]} : vector<16x166xbf16> to vector<16x128xbf16>
    %28 = vector.extract_strided_slice %26 {offsets = [0, 1], sizes = [16, 128], strides = [1, 1]} : vector<16x166xbf16> to vector<16x128xbf16>
    %29 = vector.extract_strided_slice %26 {offsets = [0, 2], sizes = [16, 128], strides = [1, 1]} : vector<16x166xbf16> to vector<16x128xbf16>
    %30 = vector.extract_strided_slice %26 {offsets = [0, 18], sizes = [16, 128], strides = [1, 1]} : vector<16x166xbf16> to vector<16x128xbf16>
    %31 = vector.extract_strided_slice %26 {offsets = [0, 19], sizes = [16, 128], strides = [1, 1]} : vector<16x166xbf16> to vector<16x128xbf16>
    %32 = vector.extract_strided_slice %26 {offsets = [0, 20], sizes = [16, 128], strides = [1, 1]} : vector<16x166xbf16> to vector<16x128xbf16>
    %33 = vector.extract_strided_slice %26 {offsets = [0, 36], sizes = [16, 128], strides = [1, 1]} : vector<16x166xbf16> to vector<16x128xbf16>
    %34 = vector.extract_strided_slice %26 {offsets = [0, 37], sizes = [16, 128], strides = [1, 1]} : vector<16x166xbf16> to vector<16x128xbf16>
    %35 = vector.extract_strided_slice %26 {offsets = [0, 38], sizes = [16, 128], strides = [1, 1]} : vector<16x166xbf16> to vector<16x128xbf16>
    %36 = tpu.concatenate %27, %28, %29, %30, %31, %32, %33, %34, %35 in 0 : vector<16x128xbf16>, vector<16x128xbf16>, vector<16x128xbf16>, vector<16x128xbf16>, vector<16x128xbf16>, vector<16x128xbf16>, vector<16x128xbf16>, vector<16x128xbf16>, vector<16x128xbf16> -> vector<144x128xbf16>
    %c0_10 = arith.constant 0 : index
    %c0_11 = arith.constant 0 : index
    %37 = vector.load %arg4[%c0_10, %c0_11] : memref<16x144xbf16, #tpu.memory_space<vmem>>, vector<16x144xbf16>
    %cst_12 = arith.constant dense<0.000000e+00> : vector<16x128xf32>
    %38 = tpu.matmul %37, %36, %cst_12 {dimension_numbers = #tpu.dot_dimension_numbers<[1], [0], [0], [1], [0, 0, 1, 1], [], []>} : vector<16x144xbf16>, vector<144x128xbf16>, vector<16x128xf32> -> vector<16x128xf32>
    %c0_13 = arith.constant 0 : index
    %c0_14 = arith.constant 0 : index
    %39 = vector.load %arg5[%c0_13, %c0_14] : memref<16x1xf32, #tpu.memory_space<vmem>>, vector<16x1xf32>
    %40 = vector.broadcast %39 : vector<16x1xf32> to vector<16x128xf32>
    %41 = arith.addf %38, %40 : vector<16x128xf32>
    %c0_15 = arith.constant 0 : index
    %c0_16 = arith.constant 0 : index
    %42 = vector.load %arg6[%c0_15, %c0_16] : memref<1x128xf32, #tpu.memory_space<vmem>>, vector<1x128xf32>
    %43 = vector.broadcast %42 : vector<1x128xf32> to vector<16x128xf32>
    %44 = arith.mulf %41, %43 : vector<16x128xf32>
    %45 = vector.extract_strided_slice %44 {offsets = [0, 0], sizes = [8, 128], strides = [1, 1]} : vector<16x128xf32> to vector<8x128xf32>
    %46 = vector.extract_strided_slice %44 {offsets = [8, 0], sizes = [8, 128], strides = [1, 1]} : vector<16x128xf32> to vector<8x128xf32>
    %47 = arith.mulf %45, %45 : vector<8x128xf32>
    %48 = arith.mulf %46, %46 : vector<8x128xf32>
    %49 = arith.addf %47, %48 : vector<8x128xf32>
    %50 = math.sqrt %49 : vector<8x128xf32>
    %cst_17 = arith.constant dense<0.000000e+00> : vector<8xf32>
    %51 = vector.multi_reduction <add>, %50, %cst_17 [1] : vector<8x128xf32> to vector<8xf32>
    %52 = vector.shape_cast %51 : vector<8xf32> to vector<8x1xf32>
    %cst_18 = arith.constant dense<0.000000e+00> : vector<8xf32>
    %53 = vector.multi_reduction <add>, %49, %cst_18 [1] : vector<8x128xf32> to vector<8xf32>
    %54 = vector.shape_cast %53 : vector<8xf32> to vector<8x1xf32>
    %55 = tpu.concatenate %52, %54 in 1 : vector<8x1xf32>, vector<8x1xf32> -> vector<8x2xf32>
    %c0_19 = arith.constant 0 : index
    %c0_20 = arith.constant 0 : index
    %c0_21 = arith.constant 0 : index
    %c0_22 = arith.constant 0 : index
    %56 = vector.load %arg10[%c0_19, %c0_20, %c0_21, %c0_22] : memref<1x1x8x2xf32, #tpu.memory_space<vmem>>, vector<1x1x8x2xf32>
    %57 = vector.shape_cast %56 : vector<1x1x8x2xf32> to vector<8x2xf32>
    %58 = vector.shape_cast %55 : vector<8x2xf32> to vector<1x1x8x2xf32>
    tpu.vector_store %arg10[%c0_19, %c0_20, %c0_21, %c0_22], %58 {strides = array<i32>} : memref<1x1x8x2xf32, #tpu.memory_space<vmem>>, vector<1x1x8x2xf32>,
    %c0_23 = arith.constant 0 : index
    %c0_24 = arith.constant 0 : index
    %c0_25 = arith.constant 0 : index
    %59 = vector.load %arg9[%c0_23, %c0_24, %c0_25] : memref<1x16x128xf32, #tpu.memory_space<vmem>>, vector<1x16x128xf32>
    %60 = vector.shape_cast %59 : vector<1x16x128xf32> to vector<16x128xf32>
    %61 = vector.shape_cast %44 : vector<16x128xf32> to vector<1x16x128xf32>
    tpu.vector_store %arg9[%c0_23, %c0_24, %c0_25], %61 {strides = array<i32>} : memref<1x16x128xf32, #tpu.memory_space<vmem>>, vector<1x16x128xf32>,
    return
  }
  func.func @transform_0(%arg0: i32, %arg1: i32) -> (i32, i32, i32) {
    %c0_i32 = arith.constant 0 : i32
    %c0_i32_0 = arith.constant 0 : i32
    return %arg0, %c0_i32, %arg1 : i32, i32, i32
  }
  func.func @transform_1(%arg0: i32, %arg1: i32) -> (i32, i32, i32) {
    %c1_i32 = arith.constant 1 : i32
    %0 = arith.addi %arg1, %c1_i32 : i32
    %c1_i32_0 = arith.constant 1 : i32
    %1 = arith.muli %0, %c1_i32_0 : i32
    %c0_i32 = arith.constant 0 : i32
    %c0_i32_1 = arith.constant 0 : i32
    return %arg0, %c0_i32, %1 : i32, i32, i32
  }
  func.func @transform_2(%arg0: i32, %arg1: i32) -> (i32, i32) {
    %c0_i32 = arith.constant 0 : i32
    %c0_i32_0 = arith.constant 0 : i32
    %c0_i32_1 = arith.constant 0 : i32
    return %c0_i32, %c0_i32_0 : i32, i32
  }
  func.func @transform_3(%arg0: i32, %arg1: i32) -> (i32, i32) {
    %c0_i32 = arith.constant 0 : i32
    %c0_i32_0 = arith.constant 0 : i32
    %c0_i32_1 = arith.constant 0 : i32
    return %c0_i32, %c0_i32_0 : i32, i32
  }
  func.func @transform_4(%arg0: i32, %arg1: i32) -> (i32, i32) {
    %c0_i32 = arith.constant 0 : i32
    %c0_i32_0 = arith.constant 0 : i32
    return %c0_i32, %arg1 : i32, i32
  }
  func.func @transform_5(%arg0: i32, %arg1: i32) -> (i32, i32) {
    %c0_i32 = arith.constant 0 : i32
    %c0_i32_0 = arith.constant 0 : i32
    %c0_i32_1 = arith.constant 0 : i32
    return %c0_i32, %c0_i32_0 : i32, i32
  }
  func.func @transform_6(%arg0: i32, %arg1: i32) -> (i32, i32) {
    %c0_i32 = arith.constant 0 : i32
    %c0_i32_0 = arith.constant 0 : i32
    %c0_i32_1 = arith.constant 0 : i32
    return %c0_i32, %c0_i32_0 : i32, i32
  }
  func.func @transform_7(%arg0: i32, %arg1: i32) -> (i32, i32, i32) {
    %c0_i32 = arith.constant 0 : i32
    %c0_i32_0 = arith.constant 0 : i32
    return %arg0, %c0_i32, %arg1 : i32, i32, i32
  }
  func.func @transform_8(%arg0: i32, %arg1: i32) -> (i32, i32, i32, i32) {
    %c0_i32 = arith.constant 0 : i32
    %c0_i32_0 = arith.constant 0 : i32
    %c0_i32_1 = arith.constant 0 : i32
    return %arg0, %arg1, %c0_i32, %c0_i32_0 : i32, i32, i32, i32
  }
}

</mosaic_0001>

<llo_original>
// kernel: inconv_forward.5
$region0: #{inconv_forward.5}
  #allocation0 [shape = 'u32[]', space=smem, size = 0x4, offset = 0x4, fixed_abs, tag = 'smem constant byte address 0x4 - core index']
  #allocation1 [shape = 'u32[144,128]{1,0:T(1,128)}', space=vmem, size = 0x12000, scoped, tag = 'internal scratch']
  %s0 = inlined_call_operand.vmem [shape: f32[2,16,384], index: 0, kind: input, shape index: {}]
  %s1 = inlined_call_operand.vmem [shape: f32[8,1], index: 1, kind: input, shape index: {}]
  %s2 = inlined_call_operand.vmem [shape: f32[8,1], index: 2, kind: input, shape index: {}]
  %s3 = inlined_call_operand.vmem [shape: f32[2,16,384], index: 3, kind: output, shape index: {}]
  %s4 = sld [smem:[#allocation0]]
  $region117: #{inconv_forward.5} parent=0
    _
  %s6 = ssub.s32 1, %s4
  %s7 = scalar_select 0, %s6, %s4
  $region1: #{inconv_forward.5} parent=0
    #allocation2 [shape = 'u8[16384]{0}', space=vmem, size = 0x4000, scoped, tag = 'input window, operand 0']
    #allocation3 [shape = 'u8[16384]{0}', space=vmem, size = 0x4000, scoped, tag = 'output window, operand 0']
    loop: start=0, step=1, limit=8
    $region2: #{inconv_forward.5} parent=1 // loop_pre_header
      _
    $region3: #{inconv_forward.5} parent=1 // loop_header
      %s9 = sphi 0, %s13
      %p10 = scmp.ge.s32.totalorder %s9, 8
      %s16 = sphi 0, %s28
      %s17 = sphi 0, %s24
      %s18 = sphi 0, %s16
      %s19 = sphi 0, %s17
      %s20 = sphi 0, %s18
      %s21 = sphi 0, %s19
      %s33 = sphi 0, %s35
      %s36 = sphi 0, %s33
      %s37 = sphi 0, %s36
      %s53 = sphi 0, %s37
      %s57 = sphi 0, %s57
      %s59 = sphi 0, %s57
      %s60 = sphi 0, %s59
      %s74 = sphi 0, %s60
      %s78 = sphi 0, %s78
      %s80 = sphi 0, %s78
      %s81 = sphi 0, %s80
      %s95 = sphi 0, %s81
      %s103 = sphi 0, %s105
      %s106 = sphi 0, %s103
      %s107 = sphi 0, %s106
      %s123 = sphi 0, %s107
    $region4: #{inconv_forward.5} parent=1 // loop_header_branch
      %12 = sbr.rel (%p10) target = $region8
    $region5: #{inconv_forward.5} parent=1 // loop_body
      %s14 = ssub.s32 %s9, 1
      %s15 = ssub.s32 %s9, 2
      %s22 = sadd.s32 1, %s17
      %p23 = scmp.ge.s32.totalorder %s22, 3
      %s24 = scalar_select %p23, 0, %s22
      %s25 = sadd.s32 1, %s16
      %s26 = scalar_select %p23, %s25, %s16
      %p27 = scmp.ge.s32.totalorder %s26, 2
      %s28 = scalar_select %p27, 0, %s26
      %s29 = ssub.s32 %s16, %s28
      %s30 = ssub.s32 %s17, %s24
      %s31 = sor.u32 %s29, %s30
      %p32 = scmp.eq.s32.totalorder %s31, 0
      %s34 = sadd.s32 %s33, 1
      %s35 = scalar_select %p32, %s33, %s34
      %p38 = pneg %p32
      %p39 = scmp.eq.s32.totalorder %s9, 5
      %p40 = por %p38, %p39
      %p41 = scmp.ne.s32.totalorder %s33, %s36
      %p42 = scmp.eq.s32.totalorder %s9, 0
      %p43 = por %p41, %p42
      %p44 = scmp.ne.s32.totalorder %s33, %s36
      %p45 = scmp.eq.s32.totalorder %s14, 5
      %p46 = por %p44, %p45
      %p47 = scmp.ne.s32.totalorder %s36, %s37
      %p48 = scmp.eq.s32.totalorder %s14, 0
      %p49 = por %p47, %p48
      %p50 = scmp.ne.s32.totalorder %s36, %s37
      %p51 = scmp.eq.s32.totalorder %s15, 5
      %p52 = por %p50, %p51
      %p54 = scmp.ne.s32.totalorder %s37, %s53
      %p55 = scmp.eq.s32.totalorder %s15, 0
      %p56 = por %p54, %p55
      %s58 = sadd.s32 %s57, 1
      %p61 = scmp.eq.s32.totalorder %s9, 5
      %p62 = scmp.ne.s32.totalorder %s57, %s59
      %p63 = scmp.eq.s32.totalorder %s9, 0
      %p64 = por %p62, %p63
      %p65 = scmp.ne.s32.totalorder %s57, %s59
      %p66 = scmp.eq.s32.totalorder %s14, 5
      %p67 = por %p65, %p66
      %p68 = scmp.ne.s32.totalorder %s59, %s60
      %p69 = scmp.eq.s32.totalorder %s14, 0
      %p70 = por %p68, %p69
      %p71 = scmp.ne.s32.totalorder %s59, %s60
      %p72 = scmp.eq.s32.totalorder %s15, 5
      %p73 = por %p71, %p72
      %p75 = scmp.ne.s32.totalorder %s60, %s74
      %p76 = scmp.eq.s32.totalorder %s15, 0
      %p77 = por %p75, %p76
      %s79 = sadd.s32 %s78, 1
      %p82 = scmp.eq.s32.totalorder %s9, 5
      %p83 = scmp.ne.s32.totalorder %s78, %s80
      %p84 = scmp.eq.s32.totalorder %s9, 0
      %p85 = por %p83, %p84
      %p86 = scmp.ne.s32.totalorder %s78, %s80
      %p87 = scmp.eq.s32.totalorder %s14, 5
      %p88 = por %p86, %p87
      %p89 = scmp.ne.s32.totalorder %s80, %s81
      %p90 = scmp.eq.s32.totalorder %s14, 0
      %p91 = por %p89, %p90
      %p92 = scmp.ne.s32.totalorder %s80, %s81
      %p93 = scmp.eq.s32.totalorder %s15, 5
      %p94 = por %p92, %p93
      %p96 = scmp.ne.s32.totalorder %s81, %s95
      %p97 = scmp.eq.s32.totalorder %s15, 0
      %p98 = por %p96, %p97
      %s99 = ssub.s32 %s16, %s28
      %s100 = ssub.s32 %s17, %s24
      %s101 = sor.u32 %s99, %s100
      %p102 = scmp.eq.s32.totalorder %s101, 0
      %s104 = sadd.s32 %s103, 1
      %s105 = scalar_select %p102, %s103, %s104
      %p108 = pneg %p102
      %p109 = scmp.eq.s32.totalorder %s9, 5
      %p110 = por %p108, %p109
      %p111 = scmp.ne.s32.totalorder %s103, %s106
      %p112 = scmp.eq.s32.totalorder %s9, 0
      %p113 = por %p111, %p112
      %p114 = scmp.ne.s32.totalorder %s103, %s106
      %p115 = scmp.eq.s32.totalorder %s14, 5
      %p116 = por %p114, %p115
      %p117 = scmp.ne.s32.totalorder %s106, %s107
      %p118 = scmp.eq.s32.totalorder %s14, 0
      %p119 = por %p117, %p118
      %p120 = scmp.ne.s32.totalorder %s106, %s107
      %p121 = scmp.eq.s32.totalorder %s15, 5
      %p122 = por %p120, %p121
      %p124 = scmp.ne.s32.totalorder %s107, %s123
      %p125 = scmp.eq.s32.totalorder %s15, 0
      %p126 = por %p124, %p125
      %p127 = scmp.le.s32.totalorder 1, %s9
      %p128 = scmp.lt.s32.totalorder %s9, 7
      %p129 = pnand %p127, %p128
      %p130 = pneg %p129
      // Predicated region
      $region9: #{inconv_forward.5} parent=5 // pred_check
        _
      $region10: #{inconv_forward.5} parent=5 // pred_check_branch
        %132 = sbr.rel (%p129) target = $region12
      $region11: #{inconv_forward.5} parent=5 // pred_region
        %s133 = ssub.s32 %s9, 1
        // Predicated region
        $region13: #{inconv_forward.5} parent=11 // pred_check
          %p134 = pneg %p70
        $region14: #{inconv_forward.5} parent=11 // pred_check_branch
          %136 = sbr.rel (%p134) target = $region16
        $region15: #{inconv_forward.5} parent=11 // pred_region
          _
        $region16: #{inconv_forward.5} parent=11 // pred_fallthru
          _
        // Predicated region
        $region17: #{inconv_forward.5} parent=11 // pred_check
          %p137 = pneg %p91
        $region18: #{inconv_forward.5} parent=11 // pred_check_branch
          %139 = sbr.rel (%p137) target = $region20
        $region19: #{inconv_forward.5} parent=11 // pred_region
          _
        $region20: #{inconv_forward.5} parent=11 // pred_fallthru
          _
      $region12: #{inconv_forward.5} parent=5 // pred_fallthru
        _
      %p140 = scmp.lt.s32.totalorder %s9, 6
      // Predicated region
      $region21: #{inconv_forward.5} parent=5 // pred_check
        %p141 = pneg %p140
      $region22: #{inconv_forward.5} parent=5 // pred_check_branch
        %143 = sbr.rel (%p141) target = $region24
      $region23: #{inconv_forward.5} parent=5 // pred_region
        // Predicated region
        $region25: #{inconv_forward.5} parent=23 // pred_check
          %p144 = pneg %p43
        $region26: #{inconv_forward.5} parent=23 // pred_check_branch
          %146 = sbr.rel (%p144) target = $region28
        $region27: #{inconv_forward.5} parent=23 // pred_region
          %s147 = sand.u32 %s33, 1
          %s148 = sand.u32 %s33, 1
          %s149 = smul.addr %s148, 16
          %s150 = scalar_lea.vmem [#allocation2], %s149
          %s151 = smul.addr %s16, 6
          %s152 = sadd.s32 %s17, %s151
          %s153 = smul.addr %s152, 8
          %s154 = scalar_lea.vmem %s0, %s153
          // Predicated region
          $region29: #{inconv_forward.5} parent=27 // pred_check
            _
          $region30: #{inconv_forward.5} parent=27 // pred_check_branch
            %156 = sbr.rel (0) target = $region32
          $region31: #{inconv_forward.5} parent=27 // pred_region
            // Predicated region
            $region33: #{inconv_forward.5} parent=31 // pred_check
              _
            $region34: #{inconv_forward.5} parent=31 // pred_check_branch
              %158 = sbr.rel (0) target = $region36
            $region35: #{inconv_forward.5} parent=31 // pred_region
              // Predicated region
              $region48: #{inconv_forward.5} parent=35 // pred_check
                _
              $region49: #{inconv_forward.5} parent=35 // pred_check_branch
                %175 = sbr.rel (0) target = $region51
              $region50: #{inconv_forward.5} parent=35 // pred_region
                loop: start=0, step=1, limit=1
                $region52: #{inconv_forward.5} parent=50 // loop_pre_header
                  _
                $region53: #{inconv_forward.5} parent=50 // loop_header
                  %s177 = sphi 0, %s181
                  %p178 = scmp.ge.s32.totalorder %s177, 1
                  %s182 = sphi %s154, %s154
                  %s183 = sphi %s150, %s150
                $region54: #{inconv_forward.5} parent=50 // loop_header_branch
                  %180 = sbr.rel (%p178) target = $region58
                $region55: #{inconv_forward.5} parent=50 // loop_body
                  %v184 = vld [vmem:[%s182] sm:$0xff]
                  %185 = vst [vmem:[%s183] sm:$0xff] %v184
                  %v186 = vld [vmem:[%s182 + $0x18] sm:$0xff]
                  %187 = vst [vmem:[%s183 + $0x8] sm:$0xff] %v186
                $region56: #{inconv_forward.5} parent=50 // loop_footer
                  %s181 = sadd.s32 1, %s177
                $region57: #{inconv_forward.5} parent=50 // loop_footer_branch
                  %176 = sbr.rel target = $region53
                $region58: #{inconv_forward.5} parent=50 // loop_exit
                  _
              $region51: #{inconv_forward.5} parent=35 // pred_fallthru
                _
              // Predicated region
              $region59: #{inconv_forward.5} parent=35 // pred_check
                _
              $region60: #{inconv_forward.5} parent=35 // pred_check_branch
                %189 = sbr.rel target = $region62
              $region61: #{inconv_forward.5} parent=35 // pred_region
                _
              $region62: #{inconv_forward.5} parent=35 // pred_fallthru
                _
            $region36: #{inconv_forward.5} parent=31 // pred_fallthru
              _
            // Predicated region
            $region37: #{inconv_forward.5} parent=31 // pred_check
              _
            $region38: #{inconv_forward.5} parent=31 // pred_check_branch
              %160 = sbr.rel target = $region40
            $region39: #{inconv_forward.5} parent=31 // pred_region
              loop: start=0, step=1, limit=1
              $region41: #{inconv_forward.5} parent=39 // loop_pre_header
                _
              $region42: #{inconv_forward.5} parent=39 // loop_header
                %s163 = sphi 0, %s167
                %p164 = scmp.ge.s32.totalorder %s163, 1
                %s168 = sphi %s154, %s154
                %s169 = sphi %s150, %s150
              $region43: #{inconv_forward.5} parent=39 // loop_header_branch
                %166 = sbr.rel (%p164) target = $region47
              $region44: #{inconv_forward.5} parent=39 // loop_body
                %v170 = vld [vmem:[%s168] sm:$0xff]
                %171 = vst [vmem:[%s169] sm:$0xff] %v170
                %v172 = vld [vmem:[%s168 + $0x18] sm:$0xff]
                %173 = vst [vmem:[%s169 + $0x8] sm:$0xff] %v172
              $region45: #{inconv_forward.5} parent=39 // loop_footer
                %s167 = sadd.s32 1, %s163
              $region46: #{inconv_forward.5} parent=39 // loop_footer_branch
                %162 = sbr.rel target = $region42
              $region47: #{inconv_forward.5} parent=39 // loop_exit
                _
            $region40: #{inconv_forward.5} parent=31 // pred_fallthru
              _
          $region32: #{inconv_forward.5} parent=27 // pred_fallthru
            _
          %190 = vnop
        $region28: #{inconv_forward.5} parent=23 // pred_fallthru
          _
      $region24: #{inconv_forward.5} parent=5 // pred_fallthru
        _
      %p191 = scmp.le.s32.totalorder 1, %s9
      %p192 = scmp.lt.s32.totalorder %s9, 7
      %p193 = pnand %p191, %p192
      %p194 = pneg %p193
      // Predicated region
      $region63: #{inconv_forward.5} parent=5 // pred_check
        _
      $region64: #{inconv_forward.5} parent=5 // pred_check_branch
        %196 = sbr.rel (%p193) target = $region66
      $region65: #{inconv_forward.5} parent=5 // pred_region
        %s197 = ssub.s32 %s9, 1
        %s198 = sand.u32 %s36, 1
        %s199 = sand.u32 %s36, 1
        %s200 = smul.addr %s199, 16
        %s201 = scalar_lea.vmem [#allocation2], %s200
        // Predicated region
        $region67: #{inconv_forward.5} parent=65 // pred_check
          %p202 = pneg %p49
        $region68: #{inconv_forward.5} parent=65 // pred_check_branch
          %204 = sbr.rel (%p202) target = $region70
        $region69: #{inconv_forward.5} parent=65 // pred_region
          _
        $region70: #{inconv_forward.5} parent=65 // pred_fallthru
          _
        %s205 = sand.u32 %s36, 1
        %s206 = sand.u32 %s36, 1
        %s207 = smul.addr %s206, 16
        %s208 = scalar_lea.vmem [#allocation2], %s207
        %p209 = pneg %p49
        %p210 = pneg %p46
        %p211 = pneg %p70
        %p212 = pneg %p67
        %p213 = pneg %p91
        %p214 = pneg %p88
        %p215 = pneg %p119
        %p216 = pneg %p116
        %s217 = sand.u32 %s106, 1
        %s218 = sand.u32 %s106, 1
        %s219 = smul.addr %s218, 16
        %s220 = scalar_lea.vmem [#allocation3], %s219
        %v221 = vld [vmem:[%s201] sm:$0xff]
        %v222 = vld [vmem:[%s201 + $0x8] sm:$0xff]
        %v223 = vld [vmem:[%s1] sm:$0xff]
        %v224 = vld [vmem:[%s2] sm:$0xff]
        %v225 = vmul.f32 %v221, %v221
        %v226 = vmul.f32 %v222, %v222
        %v227 = vadd.f32 %v225, %v226
        %v228 = vmax.f32 %v227, 1e-16
        %v229 = vrsqrt.pop %v228
        %231 = vset.pattern.permute.xlu0 0
        %232 = vperm.xlu0 %231, %v224
        %v233 = vpop.permute.xlu0 %232
        %v235 = vmul.f32 %v233, %v229
        %237 = vset.pattern.permute.xlu0 0
        %238 = vperm.xlu0 %237, %v223
        %v239 = vpop.permute.xlu0 %238
        %v241 = vadd.f32 %v239, %v235
        %v242 = vmul.f32 %v221, %v241
        %v243 = vmul.f32 %v222, %v241
        %v244 = vmax.f32 %v242, 0.0
        %v245 = vmax.f32 %v243, 0.0
        %246 = vst [vmem:[%s220] sm:$0xff] %v244
        %247 = vst [vmem:[%s220 + $0x8] sm:$0xff] %v245
        %s248 = sand.u32 %s106, 1
        %s249 = sand.u32 %s106, 1
        %s250 = smul.addr %s249, 16
        %s251 = scalar_lea.vmem [#allocation3], %s250
        // Predicated region
        $region71: #{inconv_forward.5} parent=65 // pred_check
          %p252 = pneg %p116
        $region72: #{inconv_forward.5} parent=65 // pred_check_branch
          %254 = sbr.rel (%p252) target = $region74
        $region73: #{inconv_forward.5} parent=65 // pred_region
          %s255 = smul.addr %s18, 6
          %s256 = sadd.s32 %s19, %s255
          %s257 = smul.addr %s256, 8
          %s258 = scalar_lea.vmem %s3, %s257
          // Predicated region
          $region75: #{inconv_forward.5} parent=73 // pred_check
            _
          $region76: #{inconv_forward.5} parent=73 // pred_check_branch
            %260 = sbr.rel (0) target = $region78
          $region77: #{inconv_forward.5} parent=73 // pred_region
            // Predicated region
            $region79: #{inconv_forward.5} parent=77 // pred_check
              _
            $region80: #{inconv_forward.5} parent=77 // pred_check_branch
              %262 = sbr.rel (0) target = $region82
            $region81: #{inconv_forward.5} parent=77 // pred_region
              // Predicated region
              $region94: #{inconv_forward.5} parent=81 // pred_check
                _
              $region95: #{inconv_forward.5} parent=81 // pred_check_branch
                %279 = sbr.rel (0) target = $region97
              $region96: #{inconv_forward.5} parent=81 // pred_region
                loop: start=0, step=1, limit=1
                $region98: #{inconv_forward.5} parent=96 // loop_pre_header
                  _
                $region99: #{inconv_forward.5} parent=96 // loop_header
                  %s281 = sphi 0, %s285
                  %p282 = scmp.ge.s32.totalorder %s281, 1
                  %s286 = sphi %s251, %s251
                  %s287 = sphi %s258, %s258
                $region100: #{inconv_forward.5} parent=96 // loop_header_branch
                  %284 = sbr.rel (%p282) target = $region104
                $region101: #{inconv_forward.5} parent=96 // loop_body
                  %v288 = vld [vmem:[%s286] sm:$0xff]
                  %289 = vst [vmem:[%s287] sm:$0xff] %v288
                  %v290 = vld [vmem:[%s286 + $0x8] sm:$0xff]
                  %291 = vst [vmem:[%s287 + $0x18] sm:$0xff] %v290
                $region102: #{inconv_forward.5} parent=96 // loop_footer
                  %s285 = sadd.s32 1, %s281
                $region103: #{inconv_forward.5} parent=96 // loop_footer_branch
                  %280 = sbr.rel target = $region99
                $region104: #{inconv_forward.5} parent=96 // loop_exit
                  _
              $region97: #{inconv_forward.5} parent=81 // pred_fallthru
                _
              // Predicated region
              $region105: #{inconv_forward.5} parent=81 // pred_check
                _
              $region106: #{inconv_forward.5} parent=81 // pred_check_branch
                %293 = sbr.rel target = $region108
              $region107: #{inconv_forward.5} parent=81 // pred_region
                _
              $region108: #{inconv_forward.5} parent=81 // pred_fallthru
                _
            $region82: #{inconv_forward.5} parent=77 // pred_fallthru
              _
            // Predicated region
            $region83: #{inconv_forward.5} parent=77 // pred_check
              _
            $region84: #{inconv_forward.5} parent=77 // pred_check_branch
              %264 = sbr.rel target = $region86
            $region85: #{inconv_forward.5} parent=77 // pred_region
              loop: start=0, step=1, limit=1
              $region87: #{inconv_forward.5} parent=85 // loop_pre_header
                _
              $region88: #{inconv_forward.5} parent=85 // loop_header
                %s267 = sphi 0, %s271
                %p268 = scmp.ge.s32.totalorder %s267, 1
                %s272 = sphi %s251, %s251
                %s273 = sphi %s258, %s258
              $region89: #{inconv_forward.5} parent=85 // loop_header_branch
                %270 = sbr.rel (%p268) target = $region93
              $region90: #{inconv_forward.5} parent=85 // loop_body
                %v274 = vld [vmem:[%s272] sm:$0xff]
                %275 = vst [vmem:[%s273] sm:$0xff] %v274
                %v276 = vld [vmem:[%s272 + $0x8] sm:$0xff]
                %277 = vst [vmem:[%s273 + $0x18] sm:$0xff] %v276
              $region91: #{inconv_forward.5} parent=85 // loop_footer
                %s271 = sadd.s32 1, %s267
              $region92: #{inconv_forward.5} parent=85 // loop_footer_branch
                %266 = sbr.rel target = $region88
              $region93: #{inconv_forward.5} parent=85 // loop_exit
                _
            $region86: #{inconv_forward.5} parent=77 // pred_fallthru
              _
          $region78: #{inconv_forward.5} parent=73 // pred_fallthru
            _
          %294 = vnop
        $region74: #{inconv_forward.5} parent=65 // pred_fallthru
          _
      $region66: #{inconv_forward.5} parent=5 // pred_fallthru
        _
      %p295 = scmp.le.s32.totalorder 2, %s9
      // Predicated region
      $region109: #{inconv_forward.5} parent=5 // pred_check
        %p296 = pneg %p295
      $region110: #{inconv_forward.5} parent=5 // pred_check_branch
        %298 = sbr.rel (%p296) target = $region112
      $region111: #{inconv_forward.5} parent=5 // pred_region
        %s299 = ssub.s32 %s9, 2
        // Predicated region
        $region113: #{inconv_forward.5} parent=111 // pred_check
          %p300 = pneg %p122
        $region114: #{inconv_forward.5} parent=111 // pred_check_branch
          %302 = sbr.rel (%p300) target = $region116
        $region115: #{inconv_forward.5} parent=111 // pred_region
          %s303 = sand.u32 %s107, 1
          %s304 = sand.u32 %s107, 1
          %s305 = smul.addr %s304, 16
          %s306 = scalar_lea.vmem [#allocation3], %s305
        $region116: #{inconv_forward.5} parent=111 // pred_fallthru
          _
      $region112: #{inconv_forward.5} parent=5 // pred_fallthru
        _
    $region6: #{inconv_forward.5} parent=1 // loop_footer
      %s13 = sadd.s32 1, %s9
    $region7: #{inconv_forward.5} parent=1 // loop_footer_branch
      %8 = sbr.rel target = $region3
    $region8: #{inconv_forward.5} parent=1 // loop_exit
      _

// kernel: inconv_forward.3
$region0: #{inconv_forward.3}
  #allocation0 [shape = 'u32[]', space=smem, size = 0x4, offset = 0x4, fixed_abs, tag = 'smem constant byte address 0x4 - core index']
  #allocation1 [shape = 'u32[144,128]{1,0:T(1,128)}', space=vmem, size = 0x12000, scoped, tag = 'internal scratch']
  %s0 = inlined_call_operand.vmem [shape: bf16[2,8,640], index: 0, kind: input, shape index: {}, may-alias: {0,1}]
  %s1 = inlined_call_operand.vmem [shape: bf16[2,8,640], index: 1, kind: input, shape index: {}, may-alias: {0,1}]
  %s2 = inlined_call_operand.vmem [shape: bf16[16,72], index: 2, kind: input, shape index: {}]
  %s3 = inlined_call_operand.vmem [shape: f32[16,1], index: 3, kind: input, shape index: {}]
  %s4 = inlined_call_operand.vmem [shape: f32[1,512], index: 4, kind: input, shape index: {}]
  %s5 = inlined_call_operand.vmem [shape: bf16[2,16,512], index: 5, kind: output, shape index: {0}]
  %s6 = inlined_call_operand.vmem [shape: f32[2,4,8,2], index: 6, kind: output, shape index: {1}]
  %7 = xla_tuple %s5, %s6
  %s8 = sld [smem:[#allocation0]]
  $region98: #{inconv_forward.3} parent=0
    _
  %s10 = ssub.s32 1, %s8
  %s11 = scalar_select 0, %s10, %s8
  $region1: #{inconv_forward.3} parent=0
    #allocation2 [shape = 'u8[8192]{0}', space=vmem, size = 0x2000, scoped, tag = 'output window, operand 0']
    loop: start=0, step=1, limit=10
    $region2: #{inconv_forward.3} parent=1 // loop_pre_header
      _
    $region3: #{inconv_forward.3} parent=1 // loop_header
      %s13 = sphi 0, %s17
      %p14 = scmp.ge.s32.totalorder %s13, 10
      %s20 = sphi 0, %s32
      %s21 = sphi 0, %s28
      %s22 = sphi 0, %s20
      %s23 = sphi 0, %s21
      %s24 = sphi 0, %s22
      %s25 = sphi 0, %s23
      %s37 = sphi 0, %s39
      %s40 = sphi 0, %s37
      %s41 = sphi 0, %s40
      %s57 = sphi 0, %s41
      %s67 = sphi 0, %s69
      %s70 = sphi 0, %s67
      %s71 = sphi 0, %s70
      %s87 = sphi 0, %s71
      %s91 = sphi 0, %s91
      %s93 = sphi 0, %s91
      %s94 = sphi 0, %s93
      %s108 = sphi 0, %s94
      %s112 = sphi 0, %s112
      %s114 = sphi 0, %s112
      %s115 = sphi 0, %s114
      %s129 = sphi 0, %s115
      %s135 = sphi 0, %s137
      %s138 = sphi 0, %s135
      %s139 = sphi 0, %s138
      %s155 = sphi 0, %s139
      %s163 = sphi 0, %s165
      %s166 = sphi 0, %s163
      %s167 = sphi 0, %s166
      %s183 = sphi 0, %s167
      %s191 = sphi 0, %s193
      %s194 = sphi 0, %s191
      %s195 = sphi 0, %s194
      %s211 = sphi 0, %s195
    $region4: #{inconv_forward.3} parent=1 // loop_header_branch
      %16 = sbr.rel (%p14) target = $region8
    $region5: #{inconv_forward.3} parent=1 // loop_body
      %s18 = ssub.s32 %s13, 1
      %s19 = ssub.s32 %s13, 2
      %s26 = sadd.s32 1, %s21
      %p27 = scmp.ge.s32.totalorder %s26, 4
      %s28 = scalar_select %p27, 0, %s26
      %s29 = sadd.s32 1, %s20
      %s30 = scalar_select %p27, %s29, %s20
      %p31 = scmp.ge.s32.totalorder %s30, 2
      %s32 = scalar_select %p31, 0, %s30
      %s33 = ssub.s32 %s20, %s32
      %s34 = ssub.s32 %s21, %s28
      %s35 = sor.u32 %s33, %s34
      %p36 = scmp.eq.s32.totalorder %s35, 0
      %s38 = sadd.s32 %s37, 1
      %s39 = scalar_select %p36, %s37, %s38
      %p42 = pneg %p36
      %p43 = scmp.eq.s32.totalorder %s13, 7
      %p44 = por %p42, %p43
      %p45 = scmp.ne.s32.totalorder %s37, %s40
      %p46 = scmp.eq.s32.totalorder %s13, 0
      %p47 = por %p45, %p46
      %p48 = scmp.ne.s32.totalorder %s37, %s40
      %p49 = scmp.eq.s32.totalorder %s18, 7
      %p50 = por %p48, %p49
      %p51 = scmp.ne.s32.totalorder %s40, %s41
      %p52 = scmp.eq.s32.totalorder %s18, 0
      %p53 = por %p51, %p52
      %p54 = scmp.ne.s32.totalorder %s40, %s41
      %p55 = scmp.eq.s32.totalorder %s19, 7
      %p56 = por %p54, %p55
      %p58 = scmp.ne.s32.totalorder %s41, %s57
      %p59 = scmp.eq.s32.totalorder %s19, 0
      %p60 = por %p58, %p59
      %s61 = sadd.s32 %s21, 1
      %s62 = sadd.s32 %s28, 1
      %s63 = ssub.s32 %s20, %s32
      %s64 = ssub.s32 %s61, %s62
      %s65 = sor.u32 %s63, %s64
      %p66 = scmp.eq.s32.totalorder %s65, 0
      %s68 = sadd.s32 %s67, 1
      %s69 = scalar_select %p66, %s67, %s68
      %p72 = pneg %p66
      %p73 = scmp.eq.s32.totalorder %s13, 7
      %p74 = por %p72, %p73
      %p75 = scmp.ne.s32.totalorder %s67, %s70
      %p76 = scmp.eq.s32.totalorder %s13, 0
      %p77 = por %p75, %p76
      %p78 = scmp.ne.s32.totalorder %s67, %s70
      %p79 = scmp.eq.s32.totalorder %s18, 7
      %p80 = por %p78, %p79
      %p81 = scmp.ne.s32.totalorder %s70, %s71
      %p82 = scmp.eq.s32.totalorder %s18, 0
      %p83 = por %p81, %p82
      %p84 = scmp.ne.s32.totalorder %s70, %s71
      %p85 = scmp.eq.s32.totalorder %s19, 7
      %p86 = por %p84, %p85
      %p88 = scmp.ne.s32.totalorder %s71, %s87
      %p89 = scmp.eq.s32.totalorder %s19, 0
      %p90 = por %p88, %p89
      %s92 = sadd.s32 %s91, 1
      %p95 = scmp.eq.s32.totalorder %s13, 7
      %p96 = scmp.ne.s32.totalorder %s91, %s93
      %p97 = scmp.eq.s32.totalorder %s13, 0
      %p98 = por %p96, %p97
      %p99 = scmp.ne.s32.totalorder %s91, %s93
      %p100 = scmp.eq.s32.totalorder %s18, 7
      %p101 = por %p99, %p100
      %p102 = scmp.ne.s32.totalorder %s93, %s94
      %p103 = scmp.eq.s32.totalorder %s18, 0
      %p104 = por %p102, %p103
      %p105 = scmp.ne.s32.totalorder %s93, %s94
      %p106 = scmp.eq.s32.totalorder %s19, 7
      %p107 = por %p105, %p106
      %p109 = scmp.ne.s32.totalorder %s94, %s108
      %p110 = scmp.eq.s32.totalorder %s19, 0
      %p111 = por %p109, %p110
      %s113 = sadd.s32 %s112, 1
      %p116 = scmp.eq.s32.totalorder %s13, 7
      %p117 = scmp.ne.s32.totalorder %s112, %s114
      %p118 = scmp.eq.s32.totalorder %s13, 0
      %p119 = por %p117, %p118
      %p120 = scmp.ne.s32.totalorder %s112, %s114
      %p121 = scmp.eq.s32.totalorder %s18, 7
      %p122 = por %p120, %p121
      %p123 = scmp.ne.s32.totalorder %s114, %s115
      %p124 = scmp.eq.s32.totalorder %s18, 0
      %p125 = por %p123, %p124
      %p126 = scmp.ne.s32.totalorder %s114, %s115
      %p127 = scmp.eq.s32.totalorder %s19, 7
      %p128 = por %p126, %p127
      %p130 = scmp.ne.s32.totalorder %s115, %s129
      %p131 = scmp.eq.s32.totalorder %s19, 0
      %p132 = por %p130, %p131
      %s133 = ssub.s32 %s21, %s28
      %p134 = scmp.eq.s32.totalorder %s133, 0
      %s136 = sadd.s32 %s135, 1
      %s137 = scalar_select %p134, %s135, %s136
      %p140 = pneg %p134
      %p141 = scmp.eq.s32.totalorder %s13, 7
      %p142 = por %p140, %p141
      %p143 = scmp.ne.s32.totalorder %s135, %s138
      %p144 = scmp.eq.s32.totalorder %s13, 0
      %p145 = por %p143, %p144
      %p146 = scmp.ne.s32.totalorder %s135, %s138
      %p147 = scmp.eq.s32.totalorder %s18, 7
      %p148 = por %p146, %p147
      %p149 = scmp.ne.s32.totalorder %s138, %s139
      %p150 = scmp.eq.s32.totalorder %s18, 0
      %p151 = por %p149, %p150
      %p152 = scmp.ne.s32.totalorder %s138, %s139
      %p153 = scmp.eq.s32.totalorder %s19, 7
      %p154 = por %p152, %p153
      %p156 = scmp.ne.s32.totalorder %s139, %s155
      %p157 = scmp.eq.s32.totalorder %s19, 0
      %p158 = por %p156, %p157
      %s159 = ssub.s32 %s20, %s32
      %s160 = ssub.s32 %s21, %s28
      %s161 = sor.u32 %s159, %s160
      %p162 = scmp.eq.s32.totalorder %s161, 0
      %s164 = sadd.s32 %s163, 1
      %s165 = scalar_select %p162, %s163, %s164
      %p168 = pneg %p162
      %p169 = scmp.eq.s32.totalorder %s13, 7
      %p170 = por %p168, %p169
      %p171 = scmp.ne.s32.totalorder %s163, %s166
      %p172 = scmp.eq.s32.totalorder %s13, 0
      %p173 = por %p171, %p172
      %p174 = scmp.ne.s32.totalorder %s163, %s166
      %p175 = scmp.eq.s32.totalorder %s18, 7
      %p176 = por %p174, %p175
      %p177 = scmp.ne.s32.totalorder %s166, %s167
      %p178 = scmp.eq.s32.totalorder %s18, 0
      %p179 = por %p177, %p178
      %p180 = scmp.ne.s32.totalorder %s166, %s167
      %p181 = scmp.eq.s32.totalorder %s19, 7
      %p182 = por %p180, %p181
      %p184 = scmp.ne.s32.totalorder %s167, %s183
      %p185 = scmp.eq.s32.totalorder %s19, 0
      %p186 = por %p184, %p185
      %s187 = ssub.s32 %s20, %s32
      %s188 = ssub.s32 %s21, %s28
      %s189 = sor.u32 %s187, %s188
      %p190 = scmp.eq.s32.totalorder %s189, 0
      %s192 = sadd.s32 %s191, 1
      %s193 = scalar_select %p190, %s191, %s192
      %p196 = pneg %p190
      %p197 = scmp.eq.s32.totalorder %s13, 7
      %p198 = por %p196, %p197
      %p199 = scmp.ne.s32.totalorder %s191, %s194
      %p200 = scmp.eq.s32.totalorder %s13, 0
      %p201 = por %p199, %p200
      %p202 = scmp.ne.s32.totalorder %s191, %s194
      %p203 = scmp.eq.s32.totalorder %s18, 7
      %p204 = por %p202, %p203
      %p205 = scmp.ne.s32.totalorder %s194, %s195
      %p206 = scmp.eq.s32.totalorder %s18, 0
      %p207 = por %p205, %p206
      %p208 = scmp.ne.s32.totalorder %s194, %s195
      %p209 = scmp.eq.s32.totalorder %s19, 7
      %p210 = por %p208, %p209
      %p212 = scmp.ne.s32.totalorder %s195, %s211
      %p213 = scmp.eq.s32.totalorder %s19, 0
      %p214 = por %p212, %p213
      %p215 = scmp.le.s32.totalorder 1, %s13
      %p216 = scmp.lt.s32.totalorder %s13, 9
      %p217 = pnand %p215, %p216
      %p218 = pneg %p217
      // Predicated region
      $region9: #{inconv_forward.3} parent=5 // pred_check
        _
      $region10: #{inconv_forward.3} parent=5 // pred_check_branch
        %220 = sbr.rel (%p217) target = $region12
      $region11: #{inconv_forward.3} parent=5 // pred_region
        %s221 = ssub.s32 %s13, 1
        // Predicated region
        $region13: #{inconv_forward.3} parent=11 // pred_check
          %p222 = pneg %p104
        $region14: #{inconv_forward.3} parent=11 // pred_check_branch
          %224 = sbr.rel (%p222) target = $region16
        $region15: #{inconv_forward.3} parent=11 // pred_region
          _
        $region16: #{inconv_forward.3} parent=11 // pred_fallthru
          _
        // Predicated region
        $region17: #{inconv_forward.3} parent=11 // pred_check
          %p225 = pneg %p125
        $region18: #{inconv_forward.3} parent=11 // pred_check_branch
          %227 = sbr.rel (%p225) target = $region20
        $region19: #{inconv_forward.3} parent=11 // pred_region
          _
        $region20: #{inconv_forward.3} parent=11 // pred_fallthru
          _
      $region12: #{inconv_forward.3} parent=5 // pred_fallthru
        _
      %p228 = scmp.lt.s32.totalorder %s13, 8
      // Predicated region
      $region21: #{inconv_forward.3} parent=5 // pred_check
        %p229 = pneg %p228
      $region22: #{inconv_forward.3} parent=5 // pred_check_branch
        %231 = sbr.rel (%p229) target = $region24
      $region23: #{inconv_forward.3} parent=5 // pred_region
        // Predicated region
        $region25: #{inconv_forward.3} parent=23 // pred_check
          %p232 = pneg %p47
        $region26: #{inconv_forward.3} parent=23 // pred_check_branch
          %234 = sbr.rel (%p232) target = $region28
        $region27: #{inconv_forward.3} parent=23 // pred_region
          %p235 = scmp.lt.s32.totalorder %s20, 1
          %s236 = scalar_select %p235, %s20, 1
          %p237 = scmp.lt.s32.totalorder %s21, 4
          %s238 = scalar_select %p237, %s21, 4
          %s239 = smul.addr %s236, 5
          %s240 = sadd.s32 %s238, %s239
          %s241 = smul.addr %s240, 4
          %s242 = scalar_lea.vmem %s0, %s241
        $region28: #{inconv_forward.3} parent=23 // pred_fallthru
          _
        // Predicated region
        $region29: #{inconv_forward.3} parent=23 // pred_check
          %p243 = pneg %p77
        $region30: #{inconv_forward.3} parent=23 // pred_check_branch
          %245 = sbr.rel (%p243) target = $region32
        $region31: #{inconv_forward.3} parent=23 // pred_region
          %s246 = sadd.s32 %s21, 1
          %p247 = scmp.lt.s32.totalorder %s20, 1
          %s248 = scalar_select %p247, %s20, 1
          %p249 = scmp.lt.s32.totalorder %s246, 4
          %s250 = scalar_select %p249, %s246, 4
          %s251 = smul.addr %s248, 5
          %s252 = sadd.s32 %s250, %s251
          %s253 = smul.addr %s252, 4
          %s254 = scalar_lea.vmem %s1, %s253
          %s255 = sadd.s32 %s21, 1
        $region32: #{inconv_forward.3} parent=23 // pred_fallthru
          _
        // Predicated region
        $region33: #{inconv_forward.3} parent=23 // pred_check
          %p256 = pneg %p145
        $region34: #{inconv_forward.3} parent=23 // pred_check_branch
          %258 = sbr.rel (%p256) target = $region36
        $region35: #{inconv_forward.3} parent=23 // pred_region
          %p259 = scmp.lt.s32.totalorder %s21, 3
          %s260 = scalar_select %p259, %s21, 3
          %s261 = scalar_lea.vmem %s4, %s260
        $region36: #{inconv_forward.3} parent=23 // pred_fallthru
          _
      $region24: #{inconv_forward.3} parent=5 // pred_fallthru
        _
      %p262 = scmp.le.s32.totalorder 1, %s13
      %p263 = scmp.lt.s32.totalorder %s13, 9
      %p264 = pnand %p262, %p263
      %p265 = pneg %p264
      // Predicated region
      $region37: #{inconv_forward.3} parent=5 // pred_check
        _
      $region38: #{inconv_forward.3} parent=5 // pred_check_branch
        %267 = sbr.rel (%p264) target = $region40
      $region39: #{inconv_forward.3} parent=5 // pred_region
        %s268 = ssub.s32 %s13, 1
        %p269 = scmp.lt.s32.totalorder %s22, 1
        %s270 = scalar_select %p269, %s22, 1
        %p271 = scmp.lt.s32.totalorder %s23, 4
        %s272 = scalar_select %p271, %s23, 4
        %s273 = smul.addr %s270, 5
        %s274 = sadd.s32 %s272, %s273
        %s275 = smul.addr %s274, 4
        %s276 = scalar_lea.vmem %s0, %s275
        %p277 = pneg %p53
        %p278 = pneg %p50
        %s279 = sadd.s32 %s23, 1
        %p280 = scmp.lt.s32.totalorder %s22, 1
        %s281 = scalar_select %p280, %s22, 1
        %p282 = scmp.lt.s32.totalorder %s279, 4
        %s283 = scalar_select %p282, %s279, 4
        %s284 = smul.addr %s281, 5
        %s285 = sadd.s32 %s283, %s284
        %s286 = smul.addr %s285, 4
        %s287 = scalar_lea.vmem %s1, %s286
        %p288 = pneg %p83
        %p289 = pneg %p80
        %p290 = pneg %p104
        %p291 = pneg %p101
        %p292 = pneg %p125
        %p293 = pneg %p122
        %p294 = scmp.lt.s32.totalorder %s23, 3
        %s295 = scalar_select %p294, %s23, 3
        %s296 = scalar_lea.vmem %s4, %s295
        %p297 = pneg %p151
        %p298 = pneg %p148
        %p299 = pneg %p179
        %p300 = pneg %p176
        %s301 = sand.u32 %s166, 1
        %s302 = sand.u32 %s166, 1
        %s303 = smul.addr %s302, 8
        %s304 = scalar_lea.vmem [#allocation2], %s303
        %p305 = pneg %p207
        %p306 = pneg %p204
        %p307 = scmp.lt.s32.totalorder %s22, 1
        %s308 = scalar_select %p307, %s22, 1
        %p309 = scmp.lt.s32.totalorder %s23, 3
        %s310 = scalar_select %p309, %s23, 3
        %s311 = smul.addr %s308, 4
        %s312 = sadd.s32 %s310, %s311
        %s313 = smul.addr %s312, 8
        %s314 = scalar_lea.vmem %s6, %s313
        %p315 = scmp.lt.s32.totalorder %s22, 1
        %s316 = scalar_select %p315, %s22, 1
        %p317 = scmp.lt.s32.totalorder %s23, 4
        %s318 = scalar_select %p317, %s23, 4
        %s319 = smul.addr %s316, 5
        %s320 = sadd.s32 %s318, %s319
        %s321 = smul.addr %s320, 4
        %s322 = scalar_lea.vmem %s0, %s321
        %s323 = sadd.s32 %s23, 1
        %p324 = scmp.lt.s32.totalorder %s22, 1
        %s325 = scalar_select %p324, %s22, 1
        %p326 = scmp.lt.s32.totalorder %s323, 4
        %s327 = scalar_select %p326, %s323, 4
        %s328 = smul.addr %s325, 5
        %s329 = sadd.s32 %s327, %s328
        %s330 = smul.addr %s329, 4
        %s331 = scalar_lea.vmem %s1, %s330
        %s332 = sadd.s32 %s23, 1
        %p333 = scmp.lt.s32.totalorder %s23, 3
        %s334 = scalar_select %p333, %s23, 3
        %s335 = scalar_lea.vmem %s4, %s334
        %p336 = scmp.lt.s32.totalorder %s22, 1
        %s337 = scalar_select %p336, %s22, 1
        %p338 = scmp.lt.s32.totalorder %s23, 3
        %s339 = scalar_select %p338, %s23, 3
        %s340 = smul.addr %s337, 4
        %s341 = sadd.s32 %s339, %s340
        %s342 = smul.addr %s341, 8
        %s343 = scalar_lea.vmem %s6, %s342
        %v345 = vld [vmem:[%s322] sm:$0xf]
        %v346 = vld [vmem:[%s331] sm:$0xf]
        %v349 = vrot.slane %v345, 4
        %v350 = vrot.slane %v346, 4
        %351 = vrot.lane.b32.xlu0 %v349, 127
        %v352 = vpop.permute.xlu0 %351
        %353 = vrot.lane.b32.xlu0 %v350, 127
        %v354 = vpop.permute.xlu0 %353
        %vm355 = vcmask 1039360
        %v356 = vsel %vm355, %v352, %v354
        %357 = vrot.lane.b32.xlu0 %v345, 126
        %v358 = vpop.permute.xlu0 %357
        %359 = vrot.lane.b32.xlu0 %v346, 126
        %v360 = vpop.permute.xlu0 %359
        %vm361 = vcmask 1031168
        %v362 = vsel %vm361, %v358, %v360
        %363 = vrot.lane.b32.xlu0 %v349, 110
        %v364 = vpop.permute.xlu0 %363
        %365 = vrot.lane.b32.xlu0 %v350, 110
        %v366 = vpop.permute.xlu0 %365
        %vm367 = vcmask 900096
        %v368 = vsel %vm367, %v364, %v366
        %369 = vrot.lane.b32.xlu0 %v345, 109
        %v370 = vpop.permute.xlu0 %369
        %371 = vrot.lane.b32.xlu0 %v346, 109
        %v372 = vpop.permute.xlu0 %371
        %vm373 = vcmask 891904
        %v374 = vsel %vm373, %v370, %v372
        %375 = vrot.lane.b32.xlu0 %v349, 108
        %v376 = vpop.permute.xlu0 %375
        %377 = vrot.lane.b32.xlu0 %v350, 108
        %v378 = vpop.permute.xlu0 %377
        %vm379 = vcmask 883712
        %v380 = vsel %vm379, %v376, %v378
        %381 = vrot.lane.b32.xlu0 %v345, 92
        %v382 = vpop.permute.xlu0 %381
        %383 = vrot.lane.b32.xlu0 %v346, 92
        %v384 = vpop.permute.xlu0 %383
        %vm385 = vcmask 752640
        %v386 = vsel %vm385, %v382, %v384
        %387 = vrot.lane.b32.xlu0 %v349, 91
        %v388 = vpop.permute.xlu0 %387
        %389 = vrot.lane.b32.xlu0 %v350, 91
        %v390 = vpop.permute.xlu0 %389
        %vm391 = vcmask 744448
        %v392 = vsel %vm391, %v388, %v390
        %393 = vrot.lane.b32.xlu0 %v345, 90
        %v394 = vpop.permute.xlu0 %393
        %395 = vrot.lane.b32.xlu0 %v346, 90
        %v396 = vpop.permute.xlu0 %395
        %vm397 = vcmask 736256
        %v398 = vsel %vm397, %v394, %v396
        %vm399 = vcmask 1043456
        %v402 = vsel %vm399, %v345, %v356
        %v406 = vsel %vm399, %v362, %v368
        %v410 = vsel %vm399, %v374, %v380
        %v414 = vsel %vm399, %v386, %v392
        %v416 = vld [vmem:[%s2] sm:$0xf]
        %v417 = vld [vmem:[%s2 + $0x4] sm:$0xf]
        %v418 = vld [vmem:[%s3] sm:$0xff]
        %v419 = vld [vmem:[%s3 + $0x8] sm:$0xff]
        %421 = vset.pattern.permute.xlu0 0
        %422 = vperm.xlu0 %421, %v418
        %v423 = vpop.permute.xlu0 %422
        %426 = vset.pattern.permute.xlu0 0
        %427 = vperm.xlu0 %426, %v419
        %v428 = vpop.permute.xlu0 %427
        %v432 = vunpack.c.l.b16 %v416
        %v433 = vunpack.c.l.b16 %v417
        %v434 = vpack.c.b16 %v433, %v432
        %vm435 = vcmask 588800
        %v437 = vsel %vm435, %v434, 0
        %v440 = vsel %vm399, %v398, 0
        %442 = vmatprep.subr.bf16.mxu0 0
        %443 = vmatpush1.bf16.msra.mxu0 %v402
        %444 = vmatprep.subr.bf16.mxu0 0
        %445 = vmatpush1.bf16.msra.mxu0 %v406
        %446 = vmatprep.subr.bf16.mxu0 0
        %447 = vmatpush1.bf16.msra.mxu0 %v410
        %448 = vmatprep.subr.bf16.mxu0 0
        %449 = vmatpush1.bf16.msra.mxu0 %v414
        %450 = vmatprep.subr.bf16.mxu0 0
        %451 = vmatpush1.bf16.msra.mxu0 %v440
        %452 = vmatprep.subr.bf16.mxu0 0
        %453 = vmatpush1.bf16.msra.mxu0 0
        %454 = vmatprep.subr.bf16.mxu0 0
        %455 = vmatpush1.bf16.msra.mxu0 0
        %456 = vmatprep.subr.bf16.mxu0 0
        %457 = vmatpush1.bf16.msra.mxu0 0
        %458 = vmatprep.subr.bf16.mxu0 0
        %459 = vmatpush1.bf16.msra.mxu0 0
        %460 = vmatprep.subr.bf16.mxu0 0
        %461 = vmatpush1.bf16.msra.mxu0 0
        %462 = vmatprep.subr.bf16.mxu0 0
        %463 = vmatpush1.bf16.msra.mxu0 0
        %464 = vmatprep.subr.bf16.mxu0 0
        %465 = vmatpush1.bf16.msra.mxu0 0
        %466 = vmatprep.subr.bf16.mxu0 0
        %467 = vmatpush1.bf16.msra.mxu0 0
        %468 = vmatprep.subr.bf16.mxu0 0
        %469 = vmatpush1.bf16.msra.mxu0 0
        %470 = vmatprep.subr.bf16.mxu0 0
        %471 = vmatpush1.bf16.msra.mxu0 0
        %472 = vmatprep.subr.bf16.mxu0 0
        %473 = vmatpush1.bf16.msra.mxu0 0
        %474 = vmatprep.mubr.bf16.mxu0 0
        %475 = vmatmul.mubr.bf16.gmra.mrb[0].mxu0 %v437
        %v476 = vpop.f32.mrb[0].mxu0
        %v477 = vadd.f32 %v423, %v476
        %v478 = vpop.f32.mrb[0].mxu0
        %v479 = vpop.f32.mrb[0].mxu0
        %v480 = vadd.f32 %v428, %v479
        %v481 = vpop.f32.mrb[0].mxu0
        %482 = vdwg.mxu0
        %v483 = vld [vmem:[%s335] sm:$0x1]
        %v485 = vlaneseq
        %v486 = vshrl.u32 %v485, 7
        %v487 = vsub.s32 0, %v486
        %v488 = vrot.slane %v483, %v487
        %v490 = vmul.f32 %v477, %v488
        %v491 = vmul.f32 %v480, %v488
        %v492 = vmul.f32 %v490, %v490
        %v493 = vmul.f32 %v491, %v491
        %v494 = vadd.f32 %v492, %v493
        %v495 = vrsqrt.pop %v494
        %v496 = vmul.f32 %v494, %v495
        %vm497 = vcmp.eq.f32.partialorder %v494, inf
        %v498 = vsel %vm497, %v494, %v496
        %vm499 = vcmp.eq.f32.partialorder %v494, 0.0
        %v500 = vand.u32 %v494, 2147483648
        %v501 = vsel %vm499, %v500, %v498
        %502 = vadd.xlane.f32.xlu0 %v501
        %v503 = vpop.xlane.xlu0 %502
        %504 = vadd.xlane.f32.xlu0 %v494
        %v505 = vpop.xlane.xlu0 %504
        %vm506 = vcmask 7168
        %v507 = vsel %vm506, %v503, %v505
        %vm508 = vcmask 15360
        %509 = vst.msk [vmem:[%s343] sm:$0xff] %vm508, %v507
        %v510 = vpack.c.bf16 %v491, %v490
        %v512 = vunpack.c.l.b16 %v510
        %v513 = vunpack.c.h.b16 %v510
        %v514 = vpack.c.b16 %v512, %v512
        %v515 = vpack.c.b16 %v513, %v513
        %518 = vst [vmem:[%s304] sm:$0xf] %v514
        %519 = vst [vmem:[%s304 + $0x4] sm:$0xf] %v515
        %s520 = sand.u32 %s166, 1
        %s521 = sand.u32 %s166, 1
        %s522 = smul.addr %s521, 8
        %s523 = scalar_lea.vmem [#allocation2], %s522
        %p524 = scmp.lt.s32.totalorder %s22, 1
        %s525 = scalar_select %p524, %s22, 1
        %p526 = scmp.lt.s32.totalorder %s23, 3
        %s527 = scalar_select %p526, %s23, 3
        %s528 = smul.addr %s525, 4
        %s529 = sadd.s32 %s527, %s528
        %s530 = smul.addr %s529, 8
        %s531 = scalar_lea.vmem %s6, %s530
        // Predicated region
        $region41: #{inconv_forward.3} parent=39 // pred_check
          %p532 = pneg %p176
        $region42: #{inconv_forward.3} parent=39 // pred_check_branch
          %534 = sbr.rel (%p532) target = $region44
        $region43: #{inconv_forward.3} parent=39 // pred_region
          %s535 = smul.addr %s22, 8
          %s536 = sadd.s32 %s23, %s535
          %s537 = smul.addr %s536, 4
          %s538 = scalar_lea.vmem %s5, %s537
          // Predicated region
          $region45: #{inconv_forward.3} parent=43 // pred_check
            _
          $region46: #{inconv_forward.3} parent=43 // pred_check_branch
            %540 = sbr.rel (0) target = $region48
          $region47: #{inconv_forward.3} parent=43 // pred_region
            // Predicated region
            $region49: #{inconv_forward.3} parent=47 // pred_check
              _
            $region50: #{inconv_forward.3} parent=47 // pred_check_branch
              %542 = sbr.rel target = $region52
            $region51: #{inconv_forward.3} parent=47 // pred_region
              // Predicated region
              $region64: #{inconv_forward.3} parent=51 // pred_check
                _
              $region65: #{inconv_forward.3} parent=51 // pred_check_branch
                %559 = sbr.rel (0) target = $region67
              $region66: #{inconv_forward.3} parent=51 // pred_region
                loop: start=0, step=1, limit=1
                $region68: #{inconv_forward.3} parent=66 // loop_pre_header
                  _
                $region69: #{inconv_forward.3} parent=66 // loop_header
                  %s561 = sphi 0, %s565
                  %p562 = scmp.ge.s32.totalorder %s561, 1
                  %s566 = sphi %s523, %s523
                  %s567 = sphi %s538, %s538
                $region70: #{inconv_forward.3} parent=66 // loop_header_branch
                  %564 = sbr.rel (%p562) target = $region74
                $region71: #{inconv_forward.3} parent=66 // loop_body
                  _
                $region72: #{inconv_forward.3} parent=66 // loop_footer
                  %s565 = sadd.s32 1, %s561
                $region73: #{inconv_forward.3} parent=66 // loop_footer_branch
                  %560 = sbr.rel target = $region69
                $region74: #{inconv_forward.3} parent=66 // loop_exit
                  _
                loop: start=0, step=1, limit=1
                $region75: #{inconv_forward.3} parent=66 // loop_pre_header
                  _
                $region76: #{inconv_forward.3} parent=66 // loop_header
                  %s570 = sphi 0, %s574
                  %p571 = scmp.ge.s32.totalorder %s570, 1
                  %s575 = sphi %s523, %s523
                  %s576 = sphi %s538, %s538
                $region77: #{inconv_forward.3} parent=66 // loop_header_branch
                  %573 = sbr.rel (%p571) target = $region81
                $region78: #{inconv_forward.3} parent=66 // loop_body
                  %v577 = vld [vmem:[%s575] sm:$0xf]
                  %578 = vst [vmem:[%s576] sm:$0xf] %v577
                  %v579 = vld [vmem:[%s575 + $0x4] sm:$0xf]
                  %580 = vst [vmem:[%s576 + $0x10] sm:$0xf] %v579
                $region79: #{inconv_forward.3} parent=66 // loop_footer
                  %s574 = sadd.s32 1, %s570
                $region80: #{inconv_forward.3} parent=66 // loop_footer_branch
                  %569 = sbr.rel target = $region76
                $region81: #{inconv_forward.3} parent=66 // loop_exit
                  _
              $region67: #{inconv_forward.3} parent=51 // pred_fallthru
                _
            $region52: #{inconv_forward.3} parent=47 // pred_fallthru
              _
            // Predicated region
            $region53: #{inconv_forward.3} parent=47 // pred_check
              _
            $region54: #{inconv_forward.3} parent=47 // pred_check_branch
              %544 = sbr.rel (0) target = $region56
            $region55: #{inconv_forward.3} parent=47 // pred_region
              loop: start=0, step=1, limit=1
              $region57: #{inconv_forward.3} parent=55 // loop_pre_header
                _
              $region58: #{inconv_forward.3} parent=55 // loop_header
                %s547 = sphi 0, %s551
                %p548 = scmp.ge.s32.totalorder %s547, 1
                %s552 = sphi %s523, %s523
                %s553 = sphi %s538, %s538
              $region59: #{inconv_forward.3} parent=55 // loop_header_branch
                %550 = sbr.rel (%p548) target = $region63
              $region60: #{inconv_forward.3} parent=55 // loop_body
                %v554 = vld [vmem:[%s552] sm:$0xf]
                %555 = vst [vmem:[%s553] sm:$0xf] %v554
                %v556 = vld [vmem:[%s552 + $0x4] sm:$0xf]
                %557 = vst [vmem:[%s553 + $0x10] sm:$0xf] %v556
              $region61: #{inconv_forward.3} parent=55 // loop_footer
                %s551 = sadd.s32 1, %s547
              $region62: #{inconv_forward.3} parent=55 // loop_footer_branch
                %546 = sbr.rel target = $region58
              $region63: #{inconv_forward.3} parent=55 // loop_exit
                _
            $region56: #{inconv_forward.3} parent=47 // pred_fallthru
              _
          $region48: #{inconv_forward.3} parent=43 // pred_fallthru
            _
          %581 = vnop
        $region44: #{inconv_forward.3} parent=39 // pred_fallthru
          _
        // Predicated region
        $region82: #{inconv_forward.3} parent=39 // pred_check
          %p582 = pneg %p204
        $region83: #{inconv_forward.3} parent=39 // pred_check_branch
          %584 = sbr.rel (%p582) target = $region85
        $region84: #{inconv_forward.3} parent=39 // pred_region
          _
        $region85: #{inconv_forward.3} parent=39 // pred_fallthru
          _
      $region40: #{inconv_forward.3} parent=5 // pred_fallthru
        _
      %p585 = scmp.le.s32.totalorder 2, %s13
      // Predicated region
      $region86: #{inconv_forward.3} parent=5 // pred_check
        %p586 = pneg %p585
      $region87: #{inconv_forward.3} parent=5 // pred_check_branch
        %588 = sbr.rel (%p586) target = $region89
      $region88: #{inconv_forward.3} parent=5 // pred_region
        %s589 = ssub.s32 %s13, 2
        // Predicated region
        $region90: #{inconv_forward.3} parent=88 // pred_check
          %p590 = pneg %p182
        $region91: #{inconv_forward.3} parent=88 // pred_check_branch
          %592 = sbr.rel (%p590) target = $region93
        $region92: #{inconv_forward.3} parent=88 // pred_region
          %s593 = sand.u32 %s167, 1
          %s594 = sand.u32 %s167, 1
          %s595 = smul.addr %s594, 8
          %s596 = scalar_lea.vmem [#allocation2], %s595
        $region93: #{inconv_forward.3} parent=88 // pred_fallthru
          _
        // Predicated region
        $region94: #{inconv_forward.3} parent=88 // pred_check
          %p597 = pneg %p210
        $region95: #{inconv_forward.3} parent=88 // pred_check_branch
          %599 = sbr.rel (%p597) target = $region97
        $region96: #{inconv_forward.3} parent=88 // pred_region
          %p600 = scmp.lt.s32.totalorder %s24, 1
          %s601 = scalar_select %p600, %s24, 1
          %p602 = scmp.lt.s32.totalorder %s25, 3
          %s603 = scalar_select %p602, %s25, 3
          %s604 = smul.addr %s601, 4
          %s605 = sadd.s32 %s603, %s604
          %s606 = smul.addr %s605, 8
          %s607 = scalar_lea.vmem %s6, %s606
        $region97: #{inconv_forward.3} parent=88 // pred_fallthru
          _
      $region89: #{inconv_forward.3} parent=5 // pred_fallthru
        _
    $region6: #{inconv_forward.3} parent=1 // loop_footer
      %s17 = sadd.s32 1, %s13
    $region7: #{inconv_forward.3} parent=1 // loop_footer_branch
      %12 = sbr.rel target = $region3
    $region8: #{inconv_forward.3} parent=1 // loop_exit
      _

// kernel: inconv_forward.4
$region0: #{inconv_forward.4}
  #allocation0 [shape = 'u32[]', space=smem, size = 0x4, offset = 0x4, fixed_abs, tag = 'smem constant byte address 0x4 - core index']
  #allocation1 [shape = 'u32[144,128]{1,0:T(1,128)}', space=vmem, size = 0x12000, scoped, tag = 'internal scratch']
  %s0 = inlined_call_operand.vmem [shape: bf16[2,16,512], index: 0, kind: input, shape index: {}, may-alias: {0,1}]
  %s1 = inlined_call_operand.vmem [shape: bf16[2,16,512], index: 1, kind: input, shape index: {}, may-alias: {0,1}]
  %s2 = inlined_call_operand.vmem [shape: bf16[16,144], index: 2, kind: input, shape index: {}]
  %s3 = inlined_call_operand.vmem [shape: f32[16,1], index: 3, kind: input, shape index: {}]
  %s4 = inlined_call_operand.vmem [shape: f32[1,384], index: 4, kind: input, shape index: {}]
  %s5 = inlined_call_operand.vmem [shape: f32[8,1], index: 5, kind: input, shape index: {}]
  %s6 = inlined_call_operand.vmem [shape: f32[8,1], index: 6, kind: input, shape index: {}]
  %s7 = inlined_call_operand.vmem [shape: f32[2,16,384], index: 7, kind: output, shape index: {0}]
  %s8 = inlined_call_operand.vmem [shape: f32[2,3,8,2], index: 8, kind: output, shape index: {1}]
  %9 = xla_tuple %s7, %s8
  %s10 = sld [smem:[#allocation0]]
  $region185: #{inconv_forward.4} parent=0
    _
  %s12 = ssub.s32 1, %s10
  %s13 = scalar_select 0, %s12, %s10
  $region1: #{inconv_forward.4} parent=0
    #allocation2 [shape = 'u8[8192]{0}', space=vmem, size = 0x2000, scoped, tag = 'input window, operand 0']
    #allocation3 [shape = 'u8[8192]{0}', space=vmem, size = 0x2000, scoped, tag = 'input window, operand 1']
    #allocation4 [shape = 'u8[16384]{0}', space=vmem, size = 0x4000, scoped, tag = 'output window, operand 0']
    loop: start=0, step=1, limit=8
    $region2: #{inconv_forward.4} parent=1 // loop_pre_header
      _
    $region3: #{inconv_forward.4} parent=1 // loop_header
      %s15 = sphi 0, %s19
      %p16 = scmp.ge.s32.totalorder %s15, 8
      %s22 = sphi 0, %s34
      %s23 = sphi 0, %s30
      %s24 = sphi 0, %s22
      %s25 = sphi 0, %s23
      %s26 = sphi 0, %s24
      %s27 = sphi 0, %s25
      %s39 = sphi 0, %s41
      %s42 = sphi 0, %s39
      %s43 = sphi 0, %s42
      %s59 = sphi 0, %s43
      %s69 = sphi 0, %s71
      %s72 = sphi 0, %s69
      %s73 = sphi 0, %s72
      %s89 = sphi 0, %s73
      %s93 = sphi 0, %s93
      %s95 = sphi 0, %s93
      %s96 = sphi 0, %s95
      %s110 = sphi 0, %s96
      %s114 = sphi 0, %s114
      %s116 = sphi 0, %s114
      %s117 = sphi 0, %s116
      %s131 = sphi 0, %s117
      %s137 = sphi 0, %s139
      %s140 = sphi 0, %s137
      %s141 = sphi 0, %s140
      %s157 = sphi 0, %s141
      %s161 = sphi 0, %s161
      %s163 = sphi 0, %s161
      %s164 = sphi 0, %s163
      %s178 = sphi 0, %s164
      %s182 = sphi 0, %s182
      %s184 = sphi 0, %s182
      %s185 = sphi 0, %s184
      %s199 = sphi 0, %s185
      %s207 = sphi 0, %s209
      %s210 = sphi 0, %s207
      %s211 = sphi 0, %s210
      %s227 = sphi 0, %s211
      %s235 = sphi 0, %s237
      %s238 = sphi 0, %s235
      %s239 = sphi 0, %s238
      %s255 = sphi 0, %s239
    $region4: #{inconv_forward.4} parent=1 // loop_header_branch
      %18 = sbr.rel (%p16) target = $region8
    $region5: #{inconv_forward.4} parent=1 // loop_body
      %s20 = ssub.s32 %s15, 1
      %s21 = ssub.s32 %s15, 2
      %s28 = sadd.s32 1, %s23
      %p29 = scmp.ge.s32.totalorder %s28, 3
      %s30 = scalar_select %p29, 0, %s28
      %s31 = sadd.s32 1, %s22
      %s32 = scalar_select %p29, %s31, %s22
      %p33 = scmp.ge.s32.totalorder %s32, 2
      %s34 = scalar_select %p33, 0, %s32
      %s35 = ssub.s32 %s22, %s34
      %s36 = ssub.s32 %s23, %s30
      %s37 = sor.u32 %s35, %s36
      %p38 = scmp.eq.s32.totalorder %s37, 0
      %s40 = sadd.s32 %s39, 1
      %s41 = scalar_select %p38, %s39, %s40
      %p44 = pneg %p38
      %p45 = scmp.eq.s32.totalorder %s15, 5
      %p46 = por %p44, %p45
      %p47 = scmp.ne.s32.totalorder %s39, %s42
      %p48 = scmp.eq.s32.totalorder %s15, 0
      %p49 = por %p47, %p48
      %p50 = scmp.ne.s32.totalorder %s39, %s42
      %p51 = scmp.eq.s32.totalorder %s20, 5
      %p52 = por %p50, %p51
      %p53 = scmp.ne.s32.totalorder %s42, %s43
      %p54 = scmp.eq.s32.totalorder %s20, 0
      %p55 = por %p53, %p54
      %p56 = scmp.ne.s32.totalorder %s42, %s43
      %p57 = scmp.eq.s32.totalorder %s21, 5
      %p58 = por %p56, %p57
      %p60 = scmp.ne.s32.totalorder %s43, %s59
      %p61 = scmp.eq.s32.totalorder %s21, 0
      %p62 = por %p60, %p61
      %s63 = sadd.s32 %s23, 1
      %s64 = sadd.s32 %s30, 1
      %s65 = ssub.s32 %s22, %s34
      %s66 = ssub.s32 %s63, %s64
      %s67 = sor.u32 %s65, %s66
      %p68 = scmp.eq.s32.totalorder %s67, 0
      %s70 = sadd.s32 %s69, 1
      %s71 = scalar_select %p68, %s69, %s70
      %p74 = pneg %p68
      %p75 = scmp.eq.s32.totalorder %s15, 5
      %p76 = por %p74, %p75
      %p77 = scmp.ne.s32.totalorder %s69, %s72
      %p78 = scmp.eq.s32.totalorder %s15, 0
      %p79 = por %p77, %p78
      %p80 = scmp.ne.s32.totalorder %s69, %s72
      %p81 = scmp.eq.s32.totalorder %s20, 5
      %p82 = por %p80, %p81
      %p83 = scmp.ne.s32.totalorder %s72, %s73
      %p84 = scmp.eq.s32.totalorder %s20, 0
      %p85 = por %p83, %p84
      %p86 = scmp.ne.s32.totalorder %s72, %s73
      %p87 = scmp.eq.s32.totalorder %s21, 5
      %p88 = por %p86, %p87
      %p90 = scmp.ne.s32.totalorder %s73, %s89
      %p91 = scmp.eq.s32.totalorder %s21, 0
      %p92 = por %p90, %p91
      %s94 = sadd.s32 %s93, 1
      %p97 = scmp.eq.s32.totalorder %s15, 5
      %p98 = scmp.ne.s32.totalorder %s93, %s95
      %p99 = scmp.eq.s32.totalorder %s15, 0
      %p100 = por %p98, %p99
      %p101 = scmp.ne.s32.totalorder %s93, %s95
      %p102 = scmp.eq.s32.totalorder %s20, 5
      %p103 = por %p101, %p102
      %p104 = scmp.ne.s32.totalorder %s95, %s96
      %p105 = scmp.eq.s32.totalorder %s20, 0
      %p106 = por %p104, %p105
      %p107 = scmp.ne.s32.totalorder %s95, %s96
      %p108 = scmp.eq.s32.totalorder %s21, 5
      %p109 = por %p107, %p108
      %p111 = scmp.ne.s32.totalorder %s96, %s110
      %p112 = scmp.eq.s32.totalorder %s21, 0
      %p113 = por %p111, %p112
      %s115 = sadd.s32 %s114, 1
      %p118 = scmp.eq.s32.totalorder %s15, 5
      %p119 = scmp.ne.s32.totalorder %s114, %s116
      %p120 = scmp.eq.s32.totalorder %s15, 0
      %p121 = por %p119, %p120
      %p122 = scmp.ne.s32.totalorder %s114, %s116
      %p123 = scmp.eq.s32.totalorder %s20, 5
      %p124 = por %p122, %p123
      %p125 = scmp.ne.s32.totalorder %s116, %s117
      %p126 = scmp.eq.s32.totalorder %s20, 0
      %p127 = por %p125, %p126
      %p128 = scmp.ne.s32.totalorder %s116, %s117
      %p129 = scmp.eq.s32.totalorder %s21, 5
      %p130 = por %p128, %p129
      %p132 = scmp.ne.s32.totalorder %s117, %s131
      %p133 = scmp.eq.s32.totalorder %s21, 0
      %p134 = por %p132, %p133
      %s135 = ssub.s32 %s23, %s30
      %p136 = scmp.eq.s32.totalorder %s135, 0
      %s138 = sadd.s32 %s137, 1
      %s139 = scalar_select %p136, %s137, %s138
      %p142 = pneg %p136
      %p143 = scmp.eq.s32.totalorder %s15, 5
      %p144 = por %p142, %p143
      %p145 = scmp.ne.s32.totalorder %s137, %s140
      %p146 = scmp.eq.s32.totalorder %s15, 0
      %p147 = por %p145, %p146
      %p148 = scmp.ne.s32.totalorder %s137, %s140
      %p149 = scmp.eq.s32.totalorder %s20, 5
      %p150 = por %p148, %p149
      %p151 = scmp.ne.s32.totalorder %s140, %s141
      %p152 = scmp.eq.s32.totalorder %s20, 0
      %p153 = por %p151, %p152
      %p154 = scmp.ne.s32.totalorder %s140, %s141
      %p155 = scmp.eq.s32.totalorder %s21, 5
      %p156 = por %p154, %p155
      %p158 = scmp.ne.s32.totalorder %s141, %s157
      %p159 = scmp.eq.s32.totalorder %s21, 0
      %p160 = por %p158, %p159
      %s162 = sadd.s32 %s161, 1
      %p165 = scmp.eq.s32.totalorder %s15, 5
      %p166 = scmp.ne.s32.totalorder %s161, %s163
      %p167 = scmp.eq.s32.totalorder %s15, 0
      %p168 = por %p166, %p167
      %p169 = scmp.ne.s32.totalorder %s161, %s163
      %p170 = scmp.eq.s32.totalorder %s20, 5
      %p171 = por %p169, %p170
      %p172 = scmp.ne.s32.totalorder %s163, %s164
      %p173 = scmp.eq.s32.totalorder %s20, 0
      %p174 = por %p172, %p173
      %p175 = scmp.ne.s32.totalorder %s163, %s164
      %p176 = scmp.eq.s32.totalorder %s21, 5
      %p177 = por %p175, %p176
      %p179 = scmp.ne.s32.totalorder %s164, %s178
      %p180 = scmp.eq.s32.totalorder %s21, 0
      %p181 = por %p179, %p180
      %s183 = sadd.s32 %s182, 1
      %p186 = scmp.eq.s32.totalorder %s15, 5
      %p187 = scmp.ne.s32.totalorder %s182, %s184
      %p188 = scmp.eq.s32.totalorder %s15, 0
      %p189 = por %p187, %p188
      %p190 = scmp.ne.s32.totalorder %s182, %s184
      %p191 = scmp.eq.s32.totalorder %s20, 5
      %p192 = por %p190, %p191
      %p193 = scmp.ne.s32.totalorder %s184, %s185
      %p194 = scmp.eq.s32.totalorder %s20, 0
      %p195 = por %p193, %p194
      %p196 = scmp.ne.s32.totalorder %s184, %s185
      %p197 = scmp.eq.s32.totalorder %s21, 5
      %p198 = por %p196, %p197
      %p200 = scmp.ne.s32.totalorder %s185, %s199
      %p201 = scmp.eq.s32.totalorder %s21, 0
      %p202 = por %p200, %p201
      %s203 = ssub.s32 %s22, %s34
      %s204 = ssub.s32 %s23, %s30
      %s205 = sor.u32 %s203, %s204
      %p206 = scmp.eq.s32.totalorder %s205, 0
      %s208 = sadd.s32 %s207, 1
      %s209 = scalar_select %p206, %s207, %s208
      %p212 = pneg %p206
      %p213 = scmp.eq.s32.totalorder %s15, 5
      %p214 = por %p212, %p213
      %p215 = scmp.ne.s32.totalorder %s207, %s210
      %p216 = scmp.eq.s32.totalorder %s15, 0
      %p217 = por %p215, %p216
      %p218 = scmp.ne.s32.totalorder %s207, %s210
      %p219 = scmp.eq.s32.totalorder %s20, 5
      %p220 = por %p218, %p219
      %p221 = scmp.ne.s32.totalorder %s210, %s211
      %p222 = scmp.eq.s32.totalorder %s20, 0
      %p223 = por %p221, %p222
      %p224 = scmp.ne.s32.totalorder %s210, %s211
      %p225 = scmp.eq.s32.totalorder %s21, 5
      %p226 = por %p224, %p225
      %p228 = scmp.ne.s32.totalorder %s211, %s227
      %p229 = scmp.eq.s32.totalorder %s21, 0
      %p230 = por %p228, %p229
      %s231 = ssub.s32 %s22, %s34
      %s232 = ssub.s32 %s23, %s30
      %s233 = sor.u32 %s231, %s232
      %p234 = scmp.eq.s32.totalorder %s233, 0
      %s236 = sadd.s32 %s235, 1
      %s237 = scalar_select %p234, %s235, %s236
      %p240 = pneg %p234
      %p241 = scmp.eq.s32.totalorder %s15, 5
      %p242 = por %p240, %p241
      %p243 = scmp.ne.s32.totalorder %s235, %s238
      %p244 = scmp.eq.s32.totalorder %s15, 0
      %p245 = por %p243, %p244
      %p246 = scmp.ne.s32.totalorder %s235, %s238
      %p247 = scmp.eq.s32.totalorder %s20, 5
      %p248 = por %p246, %p247
      %p249 = scmp.ne.s32.totalorder %s238, %s239
      %p250 = scmp.eq.s32.totalorder %s20, 0
      %p251 = por %p249, %p250
      %p252 = scmp.ne.s32.totalorder %s238, %s239
      %p253 = scmp.eq.s32.totalorder %s21, 5
      %p254 = por %p252, %p253
      %p256 = scmp.ne.s32.totalorder %s239, %s255
      %p257 = scmp.eq.s32.totalorder %s21, 0
      %p258 = por %p256, %p257
      %p259 = scmp.le.s32.totalorder 1, %s15
      %p260 = scmp.lt.s32.totalorder %s15, 7
      %p261 = pnand %p259, %p260
      %p262 = pneg %p261
      // Predicated region
      $region9: #{inconv_forward.4} parent=5 // pred_check
        _
      $region10: #{inconv_forward.4} parent=5 // pred_check_branch
        %264 = sbr.rel (%p261) target = $region12
      $region11: #{inconv_forward.4} parent=5 // pred_region
        %s265 = ssub.s32 %s15, 1
        // Predicated region
        $region13: #{inconv_forward.4} parent=11 // pred_check
          %p266 = pneg %p106
        $region14: #{inconv_forward.4} parent=11 // pred_check_branch
          %268 = sbr.rel (%p266) target = $region16
        $region15: #{inconv_forward.4} parent=11 // pred_region
          _
        $region16: #{inconv_forward.4} parent=11 // pred_fallthru
          _
        // Predicated region
        $region17: #{inconv_forward.4} parent=11 // pred_check
          %p269 = pneg %p127
        $region18: #{inconv_forward.4} parent=11 // pred_check_branch
          %271 = sbr.rel (%p269) target = $region20
        $region19: #{inconv_forward.4} parent=11 // pred_region
          _
        $region20: #{inconv_forward.4} parent=11 // pred_fallthru
          _
        // Predicated region
        $region21: #{inconv_forward.4} parent=11 // pred_check
          %p272 = pneg %p174
        $region22: #{inconv_forward.4} parent=11 // pred_check_branch
          %274 = sbr.rel (%p272) target = $region24
        $region23: #{inconv_forward.4} parent=11 // pred_region
          _
        $region24: #{inconv_forward.4} parent=11 // pred_fallthru
          _
        // Predicated region
        $region25: #{inconv_forward.4} parent=11 // pred_check
          %p275 = pneg %p195
        $region26: #{inconv_forward.4} parent=11 // pred_check_branch
          %277 = sbr.rel (%p275) target = $region28
        $region27: #{inconv_forward.4} parent=11 // pred_region
          _
        $region28: #{inconv_forward.4} parent=11 // pred_fallthru
          _
      $region12: #{inconv_forward.4} parent=5 // pred_fallthru
        _
      %p278 = scmp.lt.s32.totalorder %s15, 6
      // Predicated region
      $region29: #{inconv_forward.4} parent=5 // pred_check
        %p279 = pneg %p278
      $region30: #{inconv_forward.4} parent=5 // pred_check_branch
        %281 = sbr.rel (%p279) target = $region32
      $region31: #{inconv_forward.4} parent=5 // pred_region
        // Predicated region
        $region33: #{inconv_forward.4} parent=31 // pred_check
          %p282 = pneg %p49
        $region34: #{inconv_forward.4} parent=31 // pred_check_branch
          %284 = sbr.rel (%p282) target = $region36
        $region35: #{inconv_forward.4} parent=31 // pred_region
          %s285 = sand.u32 %s39, 1
          %s286 = sand.u32 %s39, 1
          %s287 = smul.addr %s286, 8
          %s288 = scalar_lea.vmem [#allocation2], %s287
          %s289 = smul.addr %s22, 8
          %s290 = sadd.s32 %s23, %s289
          %s291 = smul.addr %s290, 4
          %s292 = scalar_lea.vmem %s0, %s291
          // Predicated region
          $region37: #{inconv_forward.4} parent=35 // pred_check
            _
          $region38: #{inconv_forward.4} parent=35 // pred_check_branch
            %294 = sbr.rel (0) target = $region40
          $region39: #{inconv_forward.4} parent=35 // pred_region
            // Predicated region
            $region41: #{inconv_forward.4} parent=39 // pred_check
              _
            $region42: #{inconv_forward.4} parent=39 // pred_check_branch
              %296 = sbr.rel target = $region44
            $region43: #{inconv_forward.4} parent=39 // pred_region
              // Predicated region
              $region56: #{inconv_forward.4} parent=43 // pred_check
                _
              $region57: #{inconv_forward.4} parent=43 // pred_check_branch
                %313 = sbr.rel (0) target = $region59
              $region58: #{inconv_forward.4} parent=43 // pred_region
                loop: start=0, step=1, limit=1
                $region60: #{inconv_forward.4} parent=58 // loop_pre_header
                  _
                $region61: #{inconv_forward.4} parent=58 // loop_header
                  %s315 = sphi 0, %s319
                  %p316 = scmp.ge.s32.totalorder %s315, 1
                  %s320 = sphi %s292, %s292
                  %s321 = sphi %s288, %s288
                $region62: #{inconv_forward.4} parent=58 // loop_header_branch
                  %318 = sbr.rel (%p316) target = $region66
                $region63: #{inconv_forward.4} parent=58 // loop_body
                  _
                $region64: #{inconv_forward.4} parent=58 // loop_footer
                  %s319 = sadd.s32 1, %s315
                $region65: #{inconv_forward.4} parent=58 // loop_footer_branch
                  %314 = sbr.rel target = $region61
                $region66: #{inconv_forward.4} parent=58 // loop_exit
                  _
                loop: start=0, step=1, limit=1
                $region67: #{inconv_forward.4} parent=58 // loop_pre_header
                  _
                $region68: #{inconv_forward.4} parent=58 // loop_header
                  %s324 = sphi 0, %s328
                  %p325 = scmp.ge.s32.totalorder %s324, 1
                  %s329 = sphi %s292, %s292
                  %s330 = sphi %s288, %s288
                $region69: #{inconv_forward.4} parent=58 // loop_header_branch
                  %327 = sbr.rel (%p325) target = $region73
                $region70: #{inconv_forward.4} parent=58 // loop_body
                  %v331 = vld [vmem:[%s329] sm:$0xf]
                  %332 = vst [vmem:[%s330] sm:$0xf] %v331
                  %v333 = vld [vmem:[%s329 + $0x10] sm:$0xf]
                  %334 = vst [vmem:[%s330 + $0x4] sm:$0xf] %v333
                $region71: #{inconv_forward.4} parent=58 // loop_footer
                  %s328 = sadd.s32 1, %s324
                $region72: #{inconv_forward.4} parent=58 // loop_footer_branch
                  %323 = sbr.rel target = $region68
                $region73: #{inconv_forward.4} parent=58 // loop_exit
                  _
              $region59: #{inconv_forward.4} parent=43 // pred_fallthru
                _
            $region44: #{inconv_forward.4} parent=39 // pred_fallthru
              _
            // Predicated region
            $region45: #{inconv_forward.4} parent=39 // pred_check
              _
            $region46: #{inconv_forward.4} parent=39 // pred_check_branch
              %298 = sbr.rel (0) target = $region48
            $region47: #{inconv_forward.4} parent=39 // pred_region
              loop: start=0, step=1, limit=1
              $region49: #{inconv_forward.4} parent=47 // loop_pre_header
                _
              $region50: #{inconv_forward.4} parent=47 // loop_header
                %s301 = sphi 0, %s305
                %p302 = scmp.ge.s32.totalorder %s301, 1
                %s306 = sphi %s292, %s292
                %s307 = sphi %s288, %s288
              $region51: #{inconv_forward.4} parent=47 // loop_header_branch
                %304 = sbr.rel (%p302) target = $region55
              $region52: #{inconv_forward.4} parent=47 // loop_body
                %v308 = vld [vmem:[%s306] sm:$0xf]
                %309 = vst [vmem:[%s307] sm:$0xf] %v308
                %v310 = vld [vmem:[%s306 + $0x10] sm:$0xf]
                %311 = vst [vmem:[%s307 + $0x4] sm:$0xf] %v310
              $region53: #{inconv_forward.4} parent=47 // loop_footer
                %s305 = sadd.s32 1, %s301
              $region54: #{inconv_forward.4} parent=47 // loop_footer_branch
                %300 = sbr.rel target = $region50
              $region55: #{inconv_forward.4} parent=47 // loop_exit
                _
            $region48: #{inconv_forward.4} parent=39 // pred_fallthru
              _
          $region40: #{inconv_forward.4} parent=35 // pred_fallthru
            _
          %335 = vnop
        $region36: #{inconv_forward.4} parent=31 // pred_fallthru
          _
        // Predicated region
        $region74: #{inconv_forward.4} parent=31 // pred_check
          %p336 = pneg %p79
        $region75: #{inconv_forward.4} parent=31 // pred_check_branch
          %338 = sbr.rel (%p336) target = $region77
        $region76: #{inconv_forward.4} parent=31 // pred_region
          %s339 = sand.u32 %s69, 1
          %s340 = sand.u32 %s69, 1
          %s341 = smul.addr %s340, 8
          %s342 = scalar_lea.vmem [#allocation3], %s341
          %s343 = sadd.s32 %s23, 1
          %s344 = smul.addr %s22, 8
          %s345 = sadd.s32 %s343, %s344
          %s346 = smul.addr %s345, 4
          %s347 = scalar_lea.vmem %s1, %s346
          // Predicated region
          $region78: #{inconv_forward.4} parent=76 // pred_check
            _
          $region79: #{inconv_forward.4} parent=76 // pred_check_branch
            %349 = sbr.rel (0) target = $region81
          $region80: #{inconv_forward.4} parent=76 // pred_region
            // Predicated region
            $region82: #{inconv_forward.4} parent=80 // pred_check
              _
            $region83: #{inconv_forward.4} parent=80 // pred_check_branch
              %351 = sbr.rel target = $region85
            $region84: #{inconv_forward.4} parent=80 // pred_region
              // Predicated region
              $region97: #{inconv_forward.4} parent=84 // pred_check
                _
              $region98: #{inconv_forward.4} parent=84 // pred_check_branch
                %368 = sbr.rel (0) target = $region100
              $region99: #{inconv_forward.4} parent=84 // pred_region
                loop: start=0, step=1, limit=1
                $region101: #{inconv_forward.4} parent=99 // loop_pre_header
                  _
                $region102: #{inconv_forward.4} parent=99 // loop_header
                  %s370 = sphi 0, %s374
                  %p371 = scmp.ge.s32.totalorder %s370, 1
                  %s375 = sphi %s347, %s347
                  %s376 = sphi %s342, %s342
                $region103: #{inconv_forward.4} parent=99 // loop_header_branch
                  %373 = sbr.rel (%p371) target = $region107
                $region104: #{inconv_forward.4} parent=99 // loop_body
                  _
                $region105: #{inconv_forward.4} parent=99 // loop_footer
                  %s374 = sadd.s32 1, %s370
                $region106: #{inconv_forward.4} parent=99 // loop_footer_branch
                  %369 = sbr.rel target = $region102
                $region107: #{inconv_forward.4} parent=99 // loop_exit
                  _
                loop: start=0, step=1, limit=1
                $region108: #{inconv_forward.4} parent=99 // loop_pre_header
                  _
                $region109: #{inconv_forward.4} parent=99 // loop_header
                  %s379 = sphi 0, %s383
                  %p380 = scmp.ge.s32.totalorder %s379, 1
                  %s384 = sphi %s347, %s347
                  %s385 = sphi %s342, %s342
                $region110: #{inconv_forward.4} parent=99 // loop_header_branch
                  %382 = sbr.rel (%p380) target = $region114
                $region111: #{inconv_forward.4} parent=99 // loop_body
                  %v386 = vld [vmem:[%s384] sm:$0xf]
                  %387 = vst [vmem:[%s385] sm:$0xf] %v386
                  %v388 = vld [vmem:[%s384 + $0x10] sm:$0xf]
                  %389 = vst [vmem:[%s385 + $0x4] sm:$0xf] %v388
                $region112: #{inconv_forward.4} parent=99 // loop_footer
                  %s383 = sadd.s32 1, %s379
                $region113: #{inconv_forward.4} parent=99 // loop_footer_branch
                  %378 = sbr.rel target = $region109
                $region114: #{inconv_forward.4} parent=99 // loop_exit
                  _
              $region100: #{inconv_forward.4} parent=84 // pred_fallthru
                _
            $region85: #{inconv_forward.4} parent=80 // pred_fallthru
              _
            // Predicated region
            $region86: #{inconv_forward.4} parent=80 // pred_check
              _
            $region87: #{inconv_forward.4} parent=80 // pred_check_branch
              %353 = sbr.rel (0) target = $region89
            $region88: #{inconv_forward.4} parent=80 // pred_region
              loop: start=0, step=1, limit=1
              $region90: #{inconv_forward.4} parent=88 // loop_pre_header
                _
              $region91: #{inconv_forward.4} parent=88 // loop_header
                %s356 = sphi 0, %s360
                %p357 = scmp.ge.s32.totalorder %s356, 1
                %s361 = sphi %s347, %s347
                %s362 = sphi %s342, %s342
              $region92: #{inconv_forward.4} parent=88 // loop_header_branch
                %359 = sbr.rel (%p357) target = $region96
              $region93: #{inconv_forward.4} parent=88 // loop_body
                %v363 = vld [vmem:[%s361] sm:$0xf]
                %364 = vst [vmem:[%s362] sm:$0xf] %v363
                %v365 = vld [vmem:[%s361 + $0x10] sm:$0xf]
                %366 = vst [vmem:[%s362 + $0x4] sm:$0xf] %v365
              $region94: #{inconv_forward.4} parent=88 // loop_footer
                %s360 = sadd.s32 1, %s356
              $region95: #{inconv_forward.4} parent=88 // loop_footer_branch
                %355 = sbr.rel target = $region91
              $region96: #{inconv_forward.4} parent=88 // loop_exit
                _
            $region89: #{inconv_forward.4} parent=80 // pred_fallthru
              _
          $region81: #{inconv_forward.4} parent=76 // pred_fallthru
            _
          %390 = vnop
        $region77: #{inconv_forward.4} parent=31 // pred_fallthru
          _
        // Predicated region
        $region115: #{inconv_forward.4} parent=31 // pred_check
          %p391 = pneg %p147
        $region116: #{inconv_forward.4} parent=31 // pred_check_branch
          %393 = sbr.rel (%p391) target = $region118
        $region117: #{inconv_forward.4} parent=31 // pred_region
          %p394 = scmp.lt.s32.totalorder %s23, 2
          %s395 = scalar_select %p394, %s23, 2
          %s396 = scalar_lea.vmem %s4, %s395
        $region118: #{inconv_forward.4} parent=31 // pred_fallthru
          _
      $region32: #{inconv_forward.4} parent=5 // pred_fallthru
        _
      %p397 = scmp.le.s32.totalorder 1, %s15
      %p398 = scmp.lt.s32.totalorder %s15, 7
      %p399 = pnand %p397, %p398
      %p400 = pneg %p399
      // Predicated region
      $region119: #{inconv_forward.4} parent=5 // pred_check
        _
      $region120: #{inconv_forward.4} parent=5 // pred_check_branch
        %402 = sbr.rel (%p399) target = $region122
      $region121: #{inconv_forward.4} parent=5 // pred_region
        %s403 = ssub.s32 %s15, 1
        %s404 = sand.u32 %s42, 1
        %s405 = sand.u32 %s42, 1
        %s406 = smul.addr %s405, 8
        %s407 = scalar_lea.vmem [#allocation2], %s406
        // Predicated region
        $region123: #{inconv_forward.4} parent=121 // pred_check
          %p408 = pneg %p55
        $region124: #{inconv_forward.4} parent=121 // pred_check_branch
          %410 = sbr.rel (%p408) target = $region126
        $region125: #{inconv_forward.4} parent=121 // pred_region
          _
        $region126: #{inconv_forward.4} parent=121 // pred_fallthru
          _
        %s411 = sand.u32 %s72, 1
        %s412 = sand.u32 %s72, 1
        %s413 = smul.addr %s412, 8
        %s414 = scalar_lea.vmem [#allocation3], %s413
        // Predicated region
        $region127: #{inconv_forward.4} parent=121 // pred_check
          %p415 = pneg %p85
        $region128: #{inconv_forward.4} parent=121 // pred_check_branch
          %417 = sbr.rel (%p415) target = $region130
        $region129: #{inconv_forward.4} parent=121 // pred_region
          _
        $region130: #{inconv_forward.4} parent=121 // pred_fallthru
          _
        %s418 = sand.u32 %s42, 1
        %s419 = sand.u32 %s42, 1
        %s420 = smul.addr %s419, 8
        %s421 = scalar_lea.vmem [#allocation2], %s420
        %p422 = pneg %p55
        %p423 = pneg %p52
        %s424 = sand.u32 %s72, 1
        %s425 = sand.u32 %s72, 1
        %s426 = smul.addr %s425, 8
        %s427 = scalar_lea.vmem [#allocation3], %s426
        %p428 = pneg %p85
        %p429 = pneg %p82
        %p430 = pneg %p106
        %p431 = pneg %p103
        %p432 = pneg %p127
        %p433 = pneg %p124
        %p434 = scmp.lt.s32.totalorder %s25, 2
        %s435 = scalar_select %p434, %s25, 2
        %s436 = scalar_lea.vmem %s4, %s435
        %p437 = pneg %p153
        %p438 = pneg %p150
        %p439 = pneg %p174
        %p440 = pneg %p171
        %p441 = pneg %p195
        %p442 = pneg %p192
        %p443 = pneg %p223
        %p444 = pneg %p220
        %s445 = sand.u32 %s210, 1
        %s446 = sand.u32 %s210, 1
        %s447 = smul.addr %s446, 16
        %s448 = scalar_lea.vmem [#allocation4], %s447
        %p449 = pneg %p251
        %p450 = pneg %p248
        %p451 = scmp.lt.s32.totalorder %s24, 1
        %s452 = scalar_select %p451, %s24, 1
        %p453 = scmp.lt.s32.totalorder %s25, 2
        %s454 = scalar_select %p453, %s25, 2
        %s455 = smul.addr %s452, 3
        %s456 = sadd.s32 %s454, %s455
        %s457 = smul.addr %s456, 8
        %s458 = scalar_lea.vmem %s8, %s457
        %s459 = sadd.s32 %s25, 1
        %p460 = scmp.lt.s32.totalorder %s25, 2
        %s461 = scalar_select %p460, %s25, 2
        %s462 = scalar_lea.vmem %s4, %s461
        %p463 = scmp.lt.s32.totalorder %s24, 1
        %s464 = scalar_select %p463, %s24, 1
        %p465 = scmp.lt.s32.totalorder %s25, 2
        %s466 = scalar_select %p465, %s25, 2
        %s467 = smul.addr %s464, 3
        %s468 = sadd.s32 %s466, %s467
        %s469 = smul.addr %s468, 8
        %s470 = scalar_lea.vmem %s8, %s469
        %v472 = vld [vmem:[%s407] sm:$0xf]
        %v473 = vld [vmem:[%s407 + $0x4] sm:$0xf]
        %v474 = vld [vmem:[%s414] sm:$0xf]
        %v475 = vld [vmem:[%s414 + $0x4] sm:$0xf]
        %v478 = vunpack.c.l.b16 %v472
        %v479 = vunpack.c.l.b16 %v473
        %v480 = vpack.c.b16 %v479, %v478
        %v484 = vunpack.c.l.b16 %v474
        %v485 = vunpack.c.l.b16 %v475
        %v486 = vpack.c.b16 %v485, %v484
        %v488 = vunpack.c.l.bf16 %v480
        %v489 = vunpack.c.l.bf16 %v486
        %v490 = vunpack.c.h.bf16 %v480
        %v491 = vunpack.c.h.bf16 %v486
        %v492 = vmul.f32 %v488, %v488
        %v493 = vmul.f32 %v489, %v489
        %v494 = vmul.f32 %v490, %v490
        %v495 = vmul.f32 %v491, %v491
        %v496 = vadd.f32 %v492, %v494
        %v497 = vadd.f32 %v493, %v495
        %v498 = vld [vmem:[%s5] sm:$0xff]
        %v499 = vld [vmem:[%s6] sm:$0xff]
        %v500 = vmax.f32 %v496, 1e-16
        %v501 = vmax.f32 %v497, 1e-16
        %v502 = vrsqrt.pop %v500
        %v503 = vrsqrt.pop %v501
        %505 = vset.pattern.permute.xlu0 0
        %506 = vperm.xlu0 %505, %v499
        %v507 = vpop.permute.xlu0 %506
        %v509 = vmul.f32 %v507, %v502
        %v510 = vmul.f32 %v507, %v503
        %512 = vset.pattern.permute.xlu0 0
        %513 = vperm.xlu0 %512, %v498
        %v514 = vpop.permute.xlu0 %513
        %v516 = vadd.f32 %v514, %v509
        %v517 = vadd.f32 %v514, %v510
        %v518 = vmul.f32 %v488, %v516
        %v519 = vmul.f32 %v489, %v517
        %v520 = vmul.f32 %v490, %v516
        %v521 = vmul.f32 %v491, %v517
        %v522 = vmax.f32 %v518, 0.0
        %v523 = vmax.f32 %v519, 0.0
        %v524 = vmax.f32 %v520, 0.0
        %v525 = vmax.f32 %v521, 0.0
        %v526 = vpack.c.bf16 %v524, %v522
        %v527 = vpack.c.bf16 %v525, %v523
        %530 = vrot.lane.b32.xlu0 %v526, 127
        %v531 = vpop.permute.xlu0 %530
        %532 = vrot.lane.b32.xlu0 %v527, 127
        %v533 = vpop.permute.xlu0 %532
        %vm534 = vcmask 1039360
        %v535 = vsel %vm534, %v531, %v533
        %537 = vrot.lane.b32.xlu0 %v526, 126
        %v538 = vpop.permute.xlu0 %537
        %539 = vrot.lane.b32.xlu0 %v527, 126
        %v540 = vpop.permute.xlu0 %539
        %vm541 = vcmask 1031168
        %v542 = vsel %vm541, %v538, %v540
        %544 = vrot.lane.b32.xlu0 %v526, 110
        %v545 = vpop.permute.xlu0 %544
        %546 = vrot.lane.b32.xlu0 %v527, 110
        %v547 = vpop.permute.xlu0 %546
        %vm548 = vcmask 900096
        %v549 = vsel %vm548, %v545, %v547
        %551 = vrot.lane.b32.xlu0 %v526, 109
        %v552 = vpop.permute.xlu0 %551
        %553 = vrot.lane.b32.xlu0 %v527, 109
        %v554 = vpop.permute.xlu0 %553
        %vm555 = vcmask 891904
        %v556 = vsel %vm555, %v552, %v554
        %558 = vrot.lane.b32.xlu0 %v526, 108
        %v559 = vpop.permute.xlu0 %558
        %560 = vrot.lane.b32.xlu0 %v527, 108
        %v561 = vpop.permute.xlu0 %560
        %vm562 = vcmask 883712
        %v563 = vsel %vm562, %v559, %v561
        %565 = vrot.lane.b32.xlu0 %v526, 92
        %v566 = vpop.permute.xlu0 %565
        %567 = vrot.lane.b32.xlu0 %v527, 92
        %v568 = vpop.permute.xlu0 %567
        %vm569 = vcmask 752640
        %v570 = vsel %vm569, %v566, %v568
        %572 = vrot.lane.b32.xlu0 %v526, 91
        %v573 = vpop.permute.xlu0 %572
        %574 = vrot.lane.b32.xlu0 %v527, 91
        %v575 = vpop.permute.xlu0 %574
        %vm576 = vcmask 744448
        %v577 = vsel %vm576, %v573, %v575
        %579 = vrot.lane.b32.xlu0 %v526, 90
        %v580 = vpop.permute.xlu0 %579
        %581 = vrot.lane.b32.xlu0 %v527, 90
        %v582 = vpop.permute.xlu0 %581
        %vm583 = vcmask 736256
        %v584 = vsel %vm583, %v580, %v582
        %v586 = vld [vmem:[%s2] sm:$0xff]
        %v587 = vld [vmem:[%s2 + $0x8] sm:$0xff]
        %v588 = vld [vmem:[%s3] sm:$0xff]
        %v589 = vld [vmem:[%s3 + $0x8] sm:$0xff]
        %591 = vset.pattern.permute.xlu0 0
        %592 = vperm.xlu0 %591, %v588
        %v593 = vpop.permute.xlu0 %592
        %596 = vset.pattern.permute.xlu0 0
        %597 = vperm.xlu0 %596, %v589
        %v598 = vpop.permute.xlu0 %597
        %v602 = vunpack.c.l.b16 %v586
        %v603 = vunpack.c.h.b16 %v586
        %v604 = vunpack.c.l.b16 %v587
        %v605 = vunpack.c.h.b16 %v587
        %v606 = vpack.c.b16 %v604, %v602
        %v607 = vpack.c.b16 %v605, %v603
        %vm609 = vcmask 130048
        %v611 = vsel %vm609, %v607, 0
        %613 = vmatprep.subr.bf16.mxu0 0
        %614 = vmatpush1.bf16.msra.mxu0 %v526
        %615 = vmatprep.subr.bf16.mxu0 0
        %616 = vmatpush1.bf16.msra.mxu0 %v535
        %617 = vmatprep.subr.bf16.mxu0 0
        %618 = vmatpush1.bf16.msra.mxu0 %v542
        %619 = vmatprep.subr.bf16.mxu0 0
        %620 = vmatpush1.bf16.msra.mxu0 %v549
        %621 = vmatprep.subr.bf16.mxu0 0
        %622 = vmatpush1.bf16.msra.mxu0 %v556
        %623 = vmatprep.subr.bf16.mxu0 0
        %624 = vmatpush1.bf16.msra.mxu0 %v563
        %625 = vmatprep.subr.bf16.mxu0 0
        %626 = vmatpush1.bf16.msra.mxu0 %v570
        %627 = vmatprep.subr.bf16.mxu0 0
        %628 = vmatpush1.bf16.msra.mxu0 %v577
        %629 = vmatprep.subr.bf16.mxu0 0
        %630 = vmatpush1.bf16.msra.mxu0 %v584
        %631 = vmatprep.subr.bf16.mxu0 0
        %632 = vmatpush1.bf16.msra.mxu0 0
        %633 = vmatprep.subr.bf16.mxu0 0
        %634 = vmatpush1.bf16.msra.mxu0 0
        %635 = vmatprep.subr.bf16.mxu0 0
        %636 = vmatpush1.bf16.msra.mxu0 0
        %637 = vmatprep.subr.bf16.mxu0 0
        %638 = vmatpush1.bf16.msra.mxu0 0
        %639 = vmatprep.subr.bf16.mxu0 0
        %640 = vmatpush1.bf16.msra.mxu0 0
        %641 = vmatprep.subr.bf16.mxu0 0
        %642 = vmatpush1.bf16.msra.mxu0 0
        %643 = vmatprep.subr.bf16.mxu0 0
        %644 = vmatpush1.bf16.msra.mxu0 0
        %645 = vmatprep.mubr.bf16.mxu0 %v611
        %646 = vmatmul.mubr.bf16.gmra.mrb[0].mxu0 %v606
        %v647 = vpop.f32.mrb[0].mxu0
        %v648 = vadd.f32 %v593, %v647
        %v649 = vpop.f32.mrb[0].mxu0
        %v650 = vpop.f32.mrb[0].mxu0
        %v651 = vadd.f32 %v598, %v650
        %v652 = vpop.f32.mrb[0].mxu0
        %653 = vdwg.mxu0
        %v654 = vld [vmem:[%s462] sm:$0x1]
        %v656 = vlaneseq
        %v657 = vshrl.u32 %v656, 7
        %v658 = vsub.s32 0, %v657
        %v659 = vrot.slane %v654, %v658
        %v661 = vmul.f32 %v648, %v659
        %v662 = vmul.f32 %v651, %v659
        %v663 = vmul.f32 %v661, %v661
        %v664 = vmul.f32 %v662, %v662
        %v665 = vadd.f32 %v663, %v664
        %v666 = vrsqrt.pop %v665
        %v667 = vmul.f32 %v665, %v666
        %vm668 = vcmp.eq.f32.partialorder %v665, inf
        %v669 = vsel %vm668, %v665, %v667
        %vm670 = vcmp.eq.f32.partialorder %v665, 0.0
        %v671 = vand.u32 %v665, 2147483648
        %v672 = vsel %vm670, %v671, %v669
        %673 = vadd.xlane.f32.xlu0 %v672
        %v674 = vpop.xlane.xlu0 %673
        %675 = vadd.xlane.f32.xlu0 %v665
        %v676 = vpop.xlane.xlu0 %675
        %vm677 = vcmask 7168
        %v678 = vsel %vm677, %v674, %v676
        %vm679 = vcmask 15360
        %680 = vst.msk [vmem:[%s470] sm:$0xff] %vm679, %v678
        %681 = vst [vmem:[%s448] sm:$0xff] %v661
        %682 = vst [vmem:[%s448 + $0x8] sm:$0xff] %v662
        %s683 = sand.u32 %s210, 1
        %s684 = sand.u32 %s210, 1
        %s685 = smul.addr %s684, 16
        %s686 = scalar_lea.vmem [#allocation4], %s685
        %p687 = scmp.lt.s32.totalorder %s24, 1
        %s688 = scalar_select %p687, %s24, 1
        %p689 = scmp.lt.s32.totalorder %s25, 2
        %s690 = scalar_select %p689, %s25, 2
        %s691 = smul.addr %s688, 3
        %s692 = sadd.s32 %s690, %s691
        %s693 = smul.addr %s692, 8
        %s694 = scalar_lea.vmem %s8, %s693
        // Predicated region
        $region131: #{inconv_forward.4} parent=121 // pred_check
          %p695 = pneg %p220
        $region132: #{inconv_forward.4} parent=121 // pred_check_branch
          %697 = sbr.rel (%p695) target = $region134
        $region133: #{inconv_forward.4} parent=121 // pred_region
          %s698 = smul.addr %s24, 6
          %s699 = sadd.s32 %s25, %s698
          %s700 = smul.addr %s699, 8
          %s701 = scalar_lea.vmem %s7, %s700
          // Predicated region
          $region135: #{inconv_forward.4} parent=133 // pred_check
            _
          $region136: #{inconv_forward.4} parent=133 // pred_check_branch
            %703 = sbr.rel (0) target = $region138
          $region137: #{inconv_forward.4} parent=133 // pred_region
            // Predicated region
            $region139: #{inconv_forward.4} parent=137 // pred_check
              _
            $region140: #{inconv_forward.4} parent=137 // pred_check_branch
              %705 = sbr.rel (0) target = $region142
            $region141: #{inconv_forward.4} parent=137 // pred_region
              // Predicated region
              $region154: #{inconv_forward.4} parent=141 // pred_check
                _
              $region155: #{inconv_forward.4} parent=141 // pred_check_branch
                %722 = sbr.rel (0) target = $region157
              $region156: #{inconv_forward.4} parent=141 // pred_region
                loop: start=0, step=1, limit=1
                $region158: #{inconv_forward.4} parent=156 // loop_pre_header
                  _
                $region159: #{inconv_forward.4} parent=156 // loop_header
                  %s724 = sphi 0, %s728
                  %p725 = scmp.ge.s32.totalorder %s724, 1
                  %s729 = sphi %s686, %s686
                  %s730 = sphi %s701, %s701
                $region160: #{inconv_forward.4} parent=156 // loop_header_branch
                  %727 = sbr.rel (%p725) target = $region164
                $region161: #{inconv_forward.4} parent=156 // loop_body
                  %v731 = vld [vmem:[%s729] sm:$0xff]
                  %732 = vst [vmem:[%s730] sm:$0xff] %v731
                  %v733 = vld [vmem:[%s729 + $0x8] sm:$0xff]
                  %734 = vst [vmem:[%s730 + $0x18] sm:$0xff] %v733
                $region162: #{inconv_forward.4} parent=156 // loop_footer
                  %s728 = sadd.s32 1, %s724
                $region163: #{inconv_forward.4} parent=156 // loop_footer_branch
                  %723 = sbr.rel target = $region159
                $region164: #{inconv_forward.4} parent=156 // loop_exit
                  _
              $region157: #{inconv_forward.4} parent=141 // pred_fallthru
                _
              // Predicated region
              $region165: #{inconv_forward.4} parent=141 // pred_check
                _
              $region166: #{inconv_forward.4} parent=141 // pred_check_branch
                %736 = sbr.rel target = $region168
              $region167: #{inconv_forward.4} parent=141 // pred_region
                _
              $region168: #{inconv_forward.4} parent=141 // pred_fallthru
                _
            $region142: #{inconv_forward.4} parent=137 // pred_fallthru
              _
            // Predicated region
            $region143: #{inconv_forward.4} parent=137 // pred_check
              _
            $region144: #{inconv_forward.4} parent=137 // pred_check_branch
              %707 = sbr.rel target = $region146
            $region145: #{inconv_forward.4} parent=137 // pred_region
              loop: start=0, step=1, limit=1
              $region147: #{inconv_forward.4} parent=145 // loop_pre_header
                _
              $region148: #{inconv_forward.4} parent=145 // loop_header
                %s710 = sphi 0, %s714
                %p711 = scmp.ge.s32.totalorder %s710, 1
                %s715 = sphi %s686, %s686
                %s716 = sphi %s701, %s701
              $region149: #{inconv_forward.4} parent=145 // loop_header_branch
                %713 = sbr.rel (%p711) target = $region153
              $region150: #{inconv_forward.4} parent=145 // loop_body
                %v717 = vld [vmem:[%s715] sm:$0xff]
                %718 = vst [vmem:[%s716] sm:$0xff] %v717
                %v719 = vld [vmem:[%s715 + $0x8] sm:$0xff]
                %720 = vst [vmem:[%s716 + $0x18] sm:$0xff] %v719
              $region151: #{inconv_forward.4} parent=145 // loop_footer
                %s714 = sadd.s32 1, %s710
              $region152: #{inconv_forward.4} parent=145 // loop_footer_branch
                %709 = sbr.rel target = $region148
              $region153: #{inconv_forward.4} parent=145 // loop_exit
                _
            $region146: #{inconv_forward.4} parent=137 // pred_fallthru
              _
          $region138: #{inconv_forward.4} parent=133 // pred_fallthru
            _
          %737 = vnop
        $region134: #{inconv_forward.4} parent=121 // pred_fallthru
          _
        // Predicated region
        $region169: #{inconv_forward.4} parent=121 // pred_check
          %p738 = pneg %p248
        $region170: #{inconv_forward.4} parent=121 // pred_check_branch
          %740 = sbr.rel (%p738) target = $region172
        $region171: #{inconv_forward.4} parent=121 // pred_region
          _
        $region172: #{inconv_forward.4} parent=121 // pred_fallthru
          _
      $region122: #{inconv_forward.4} parent=5 // pred_fallthru
        _
      %p741 = scmp.le.s32.totalorder 2, %s15
      // Predicated region
      $region173: #{inconv_forward.4} parent=5 // pred_check
        %p742 = pneg %p741
      $region174: #{inconv_forward.4} parent=5 // pred_check_branch
        %744 = sbr.rel (%p742) target = $region176
      $region175: #{inconv_forward.4} parent=5 // pred_region
        %s745 = ssub.s32 %s15, 2
        // Predicated region
        $region177: #{inconv_forward.4} parent=175 // pred_check
          %p746 = pneg %p226
        $region178: #{inconv_forward.4} parent=175 // pred_check_branch
          %748 = sbr.rel (%p746) target = $region180
        $region179: #{inconv_forward.4} parent=175 // pred_region
          %s749 = sand.u32 %s211, 1
          %s750 = sand.u32 %s211, 1
          %s751 = smul.addr %s750, 16
          %s752 = scalar_lea.vmem [#allocation4], %s751
        $region180: #{inconv_forward.4} parent=175 // pred_fallthru
          _
        // Predicated region
        $region181: #{inconv_forward.4} parent=175 // pred_check
          %p753 = pneg %p254
        $region182: #{inconv_forward.4} parent=175 // pred_check_branch
          %755 = sbr.rel (%p753) target = $region184
        $region183: #{inconv_forward.4} parent=175 // pred_region
          %p756 = scmp.lt.s32.totalorder %s26, 1
          %s757 = scalar_select %p756, %s26, 1
          %p758 = scmp.lt.s32.totalorder %s27, 2
          %s759 = scalar_select %p758, %s27, 2
          %s760 = smul.addr %s757, 3
          %s761 = sadd.s32 %s759, %s760
          %s762 = smul.addr %s761, 8
          %s763 = scalar_lea.vmem %s8, %s762
        $region184: #{inconv_forward.4} parent=175 // pred_fallthru
          _
      $region176: #{inconv_forward.4} parent=5 // pred_fallthru
        _
    $region6: #{inconv_forward.4} parent=1 // loop_footer
      %s19 = sadd.s32 1, %s15
    $region7: #{inconv_forward.4} parent=1 // loop_footer_branch
      %14 = sbr.rel target = $region3
    $region8: #{inconv_forward.4} parent=1 // loop_exit
      _

</llo_original>
